<compile_context>
chip_gen: v6e
topology: v6e:2x2x1
jax: 0.10.0
libtpu: 0.0.40
codegen_flags: <defaults>
</compile_context>

<pallas_src>
import functools

import numpy as np
import jax
import jax.numpy as jnp
from jax.experimental import pallas as pl
from jax.experimental.pallas import tpu as pltpu

_LANES = 128


def _round_up(x, m):
    return (x + m - 1) // m * m


def _pick_bt(batch):
    """Batch-tile rows.  >= 2 grid steps when there is enough batch so the
    "parallel" axis can shard across both TensorCores on v7x (no-op on
    v5e/v6e); multiples of 16 keep bf16 activation tiles sublane-aligned."""
    if batch <= 16:
        return 16
    return min(128, _round_up((batch + 1) // 2, 16))


def _resident(a):
    """Full-array block, constant index map: weight is DMA'd to VMEM once and
    stays resident across every grid step (block index never changes)."""
    zeros = (0,) * a.ndim
    return pl.BlockSpec(a.shape, lambda *_: zeros)


def _compiler_params(weights, act_bytes, dims):
    wbytes = sum(int(w.size) * w.dtype.itemsize for w in weights)
    # weights may be double-buffered by the pipeline; activations get a
    # generous multiple for double-buffering + f32 temporaries.
    limit = 2 * wbytes + 8 * int(act_bytes) + (4 << 20)
    limit = int(min(max(limit, 16 << 20), 56 << 20))
    return pltpu.CompilerParams(dimension_semantics=dims,
                                vmem_limit_bytes=limit)


# ----------------------------------------------------------------------------
# In-kernel building blocks (shared by all three kernels).
# ----------------------------------------------------------------------------
def _layer0(v_bf16, l0w_ref, l0b_ref):
    """Dense fused layer 0: (Bt, K) -> relu -> (Bt, 3*K) bf16 (all 3 gates)."""
    v = jnp.dot(v_bf16, l0w_ref[...],
                preferred_element_type=jnp.float32) + l0b_ref[...]
    return jnp.maximum(v, 0.0).astype(jnp.bfloat16)


def _gate_tail(v_all, g, n_layer, k, lw_ref, lb_ref, ow_ref, ob_ref):
    """Per-gate deep layers + output linear on a 128-lane-aligned slice of the
    fused layer-0 activation.  Returns f32 (Bt, K_out)."""
    vg = v_all[:, g * k:(g + 1) * k]
    for l in range(n_layer - 1):                       # static unroll
        vg = jnp.maximum(
            jnp.dot(vg, lw_ref[l * 3 + g], preferred_element_type=jnp.float32)
            + lb_ref[l * 3 + g], 0.0).astype(jnp.bfloat16)
    # out(dropout(v)) with p=0 dropout -> just the output linear, in f32.
    return jnp.dot(vg, ow_ref[g],
                   preferred_element_type=jnp.float32) + ob_ref[g]


# ----------------------------------------------------------------------------
# Kernels
# ----------------------------------------------------------------------------
def _mygru_step_kernel(n_layer, k_in, k_hid,
                       x_ref, h_ref,
                       xi_l0w, xi_l0b, xi_lw, xi_lb, xi_ow, xi_ob,
                       hh_l0w, hh_l0b, hh_lw, hh_lb, hh_ow, hh_ob,
                       out_ref):
    """Single GRU-cell step, per-gate epilogue."""
    h = h_ref[...]                                         # (Bt, k_hid) f32
    vx = _layer0(x_ref[...], xi_l0w, xi_l0b)               # (Bt, 3*k_in) bf16
    vh = _layer0(h.astype(jnp.bfloat16), hh_l0w, hh_l0b)   # (Bt, 3*k_hid) bf16

    def gates(g):
        gx = _gate_tail(vx, g, n_layer, k_in, xi_lw, xi_lb, xi_ow, xi_ob)
        gh = _gate_tail(vh, g, n_layer, k_hid, hh_lw, hh_lb, hh_ow, hh_ob)
        return gx, gh

    gx_r, gh_r = gates(0)
    r_t = jax.nn.sigmoid(gx_r + gh_r)
    gx_z, gh_z = gates(1)
    z_t = jax.nn.sigmoid(gx_z + gh_z)
    gx_n, gh_n = gates(2)
    n_t = jnp.tanh(gx_n + gh_n * r_t)
    out_ref[...] = (1.0 - z_t) * n_t + z_t * h


def _xgates_kernel(n_layer, k_in, k_hid,
                   x_ref, l0w, l0b, lw, lb, ow, ob, out_ref):
    """x-side gate chain (no recurrence) for a tile of rows; writes the fused
    (rows, 3*k_hid) gate slab [r | z | n]."""
    vx = _layer0(x_ref[...], l0w, l0b)
    for g in range(3):
        out_ref[:, g * k_hid:(g + 1) * k_hid] = _gate_tail(
            vx, g, n_layer, k_in, lw, lb, ow, ob)


def _mygru_seq_kernel(n_layer, k_hid,
                      gx_ref, h0_ref,
                      hh_l0w, hh_l0b, hh_lw, hh_lb, hh_ow, hh_ob,
                      hout_ref, h_scr):
    """One timestep of the fused T-step sweep; h carried in VMEM scratch."""
    t = pl.program_id(1)

    @pl.when(t == 0)
    def _():
        h_scr[...] = h0_ref[...]

    h = h_scr[...]                                          # (Bt, k_hid) f32
    vh = _layer0(h.astype(jnp.bfloat16), hh_l0w, hh_l0b)    # (Bt, 3*k_hid) bf16
    gx = gx_ref[0]                                          # (Bt, 3*k_hid) f32

    def tail(g):
        return _gate_tail(vh, g, n_layer, k_hid, hh_lw, hh_lb, hh_ow, hh_ob)

    r_t = jax.nn.sigmoid(gx[:, :k_hid] + tail(0))
    z_t = jax.nn.sigmoid(gx[:, k_hid:2 * k_hid] + tail(1))
    n_t = jnp.tanh(gx[:, 2 * k_hid:] + tail(2) * r_t)
    h_new = (1.0 - z_t) * n_t + z_t * h
    h_scr[...] = h_new
    hout_ref[0] = h_new


# ----------------------------------------------------------------------------
# Parameters
# ----------------------------------------------------------------------------
def init_mygru_raw_params(key, n_layer, input_dim, hidden_dim):
    """Deterministic synthetic parameters, same shapes as the torch module,
    stored (in_dim, out_dim) so y = v @ W + b matches nn.Linear."""
    def uniform(k, shape, fan_in):
        bound = 1.0 / jnp.sqrt(jnp.float32(fan_in))
        return jax.random.uniform(k, shape, jnp.float32, -bound, bound)

    keys = jax.random.split(key, 8)
    xi_lw = uniform(keys[0], (3, n_layer, input_dim, input_dim), input_dim)
    xi_lb = uniform(keys[1], (3, n_layer, 1, input_dim), input_dim)
    xi_ow = uniform(keys[2], (3, input_dim, hidden_dim), input_dim)
    xi_ob = uniform(keys[3], (3, 1, hidden_dim), input_dim)
    hh_lw = uniform(keys[4], (3, n_layer, hidden_dim, hidden_dim), hidden_dim)
    hh_lb = uniform(keys[5], (3, n_layer, 1, hidden_dim), hidden_dim)
    hh_ow = uniform(keys[6], (3, hidden_dim, hidden_dim), hidden_dim)
    hh_ob = uniform(keys[7], (3, 1, hidden_dim), hidden_dim)
    return (xi_lw, xi_lb, xi_ow, xi_ob, hh_lw, hh_lb, hh_ow, hh_ob)


def pack_mygru_params(raw, *, n_layer, input_dim, hidden_dim):
    """Gate order [r, z, n].  Per side produce:
       l0w (K, 3*K) bf16, l0b (1, 3*K) f32          fused dense layer 0
       lw  (3*max(L-1,1), K, K) bf16, lb (..,1,K)   per-gate layers >= 1
       ow  (3, K, K_out) bf16, ob (3, 1, K_out) f32 per-gate output linear
    Everything zero-padded to 128-lane multiples; padding is provably inert."""
    assert n_layer >= 1
    xi_lw, xi_lb, xi_ow, xi_ob, hh_lw, hh_lb, hh_ow, hh_ob = [
        np.asarray(a, np.float32) for a in raw]
    k_in = _round_up(input_dim, _LANES)
    k_hid = _round_up(hidden_dim, _LANES)
    L = max(n_layer - 1, 1)       # dummy (unused) slot when n_layer == 1

    def pack_side(lw, lb, ow, ob, d_in, d_out, K_in, K_out):
        l0w = np.zeros((K_in, 3 * K_in), np.float32)
        l0b = np.zeros((1, 3 * K_in), np.float32)
        dlw = np.zeros((3 * L, K_in, K_in), np.float32)
        dlb = np.zeros((3 * L, 1, K_in), np.float32)
        oww = np.zeros((3, K_in, K_out), np.float32)
        obb = np.zeros((3, 1, K_out), np.float32)
        for g in range(3):                       # gate order [r, z, n]
            c = g * K_in
            l0w[:d_in, c:c + d_in] = lw[g, 0]
            l0b[0, c:c + d_in] = lb[g, 0, 0]
            for l in range(1, n_layer):
                dlw[(l - 1) * 3 + g, :d_in, :d_in] = lw[g, l]
                dlb[(l - 1) * 3 + g, 0, :d_in] = lb[g, l, 0]
            oww[g, :d_in, :d_out] = ow[g]
            obb[g, 0, :d_out] = ob[g, 0]
        return (jnp.asarray(l0w, jnp.bfloat16), jnp.asarray(l0b, jnp.float32),
                jnp.asarray(dlw, jnp.bfloat16), jnp.asarray(dlb, jnp.float32),
                jnp.asarray(oww, jnp.bfloat16), jnp.asarray(obb, jnp.float32))

    xi = pack_side(xi_lw, xi_lb, xi_ow, xi_ob, input_dim, hidden_dim, k_in, k_hid)
    hh = pack_side(hh_lw, hh_lb, hh_ow, hh_ob, hidden_dim, hidden_dim, k_hid, k_hid)
    return xi + hh


# ----------------------------------------------------------------------------
# Wrappers
# ----------------------------------------------------------------------------
def mygru_forward(x, h, packed, *, n_layer, input_dim, hidden_dim):
    """Single GRU-cell step, matching mygru.forward(x, h)."""
    batch = x.shape[0]
    k_in = _round_up(input_dim, _LANES)
    k_hid = _round_up(hidden_dim, _LANES)
    bt = _pick_bt(batch)
    bp = _round_up(batch, bt)

    # x only feeds the MXU -> carry it as bf16 (halves its DMA); h stays f32
    # because the epilogue term z_t * h needs full precision.
    x_pad = jnp.zeros((bp, k_in), jnp.bfloat16).at[:batch, :input_dim].set(
        x.astype(jnp.bfloat16))
    h_pad = jnp.zeros((bp, k_hid), jnp.float32).at[:batch, :hidden_dim].set(h)

    kernel = functools.partial(_mygru_step_kernel, n_layer, k_in, k_hid)
    act_bytes = bt * (2 * k_in + 8 * k_hid + 2 * 3 * (k_in + k_hid))

    out = pl.pallas_call(
        kernel,
        out_shape=jax.ShapeDtypeStruct((bp, k_hid), jnp.float32),
        grid=(bp // bt,),
        in_specs=[pl.BlockSpec((bt, k_in), lambda i: (i, 0)),
                  pl.BlockSpec((bt, k_hid), lambda i: (i, 0))]
                 + [_resident(a) for a in packed],
        out_specs=pl.BlockSpec((bt, k_hid), lambda i: (i, 0)),
        compiler_params=_compiler_params(packed, act_bytes, ("parallel",)),
    )(x_pad, h_pad, *packed)

    return out[:batch, :hidden_dim]


def mygru_forward_seq(xs, h0, packed, *, n_layer, input_dim, hidden_dim):
    """Fused T-step recurrence (the call-site optimization): applies the cell
    to xs[t] for t = 0..T-1 starting from h0 and returns all hidden states
    (T, batch, hidden_dim).  Weights are DMA'd once per sequence; padding is
    done once per sequence; the x-side chain runs as one big GEMM chain."""
    T, batch, _ = xs.shape
    k_in = _round_up(input_dim, _LANES)
    k_hid = _round_up(hidden_dim, _LANES)
    xi, hh = packed[:6], packed[6:]

    # ---- stage 1: x-side gates for all timesteps at once -------------------
    rows = T * batch
    rt = min(256, _round_up(rows, 16))
    rp = _round_up(rows, rt)
    x_flat = jnp.zeros((rp, k_in), jnp.bfloat16).at[:rows, :input_dim].set(
        xs.reshape(rows, input_dim).astype(jnp.bfloat16))

    gx_flat = pl.pallas_call(
        functools.partial(_xgates_kernel, n_layer, k_in, k_hid),
        out_shape=jax.ShapeDtypeStruct((rp, 3 * k_hid), jnp.float32),
        grid=(rp // rt,),
        in_specs=[pl.BlockSpec((rt, k_in), lambda i: (i, 0))]
                 + [_resident(a) for a in xi],
        out_specs=pl.BlockSpec((rt, 3 * k_hid), lambda i: (i, 0)),
        compiler_params=_compiler_params(
            xi, rt * (2 * k_in + 12 * k_hid + 6 * k_in), ("parallel",)),
    )(x_flat, *xi)

    # ---- stage 2: time sweep, h carried in a VMEM scratch accumulator ------
    bt = _pick_bt(batch)
    bp = _round_up(batch, bt)
    gx = jnp.zeros((T, bp, 3 * k_hid), jnp.float32).at[:, :batch, :].set(
        gx_flat[:rows].reshape(T, batch, 3 * k_hid))
    h_pad = jnp.zeros((bp, k_hid), jnp.float32).at[:batch, :hidden_dim].set(h0)

    h_all = pl.pallas_call(
        functools.partial(_mygru_seq_kernel, n_layer, k_hid),
        out_shape=jax.ShapeDtypeStruct((T, bp, k_hid), jnp.float32),
        grid=(bp // bt, T),                       # T innermost: carried axis
        in_specs=[pl.BlockSpec((1, bt, 3 * k_hid), lambda b, t: (t, b, 0)),
                  pl.BlockSpec((bt, k_hid), lambda b, t: (b, 0))]
                 + [_resident(a) for a in hh],
        out_specs=pl.BlockSpec((1, bt, k_hid), lambda b, t: (t, b, 0)),
        scratch_shapes=[pltpu.VMEM((bt, k_hid), jnp.float32)],
        compiler_params=_compiler_params(
            hh, bt * (12 * k_hid + 12 * k_hid), ("parallel", "arbitrary")),
    )(gx, h_pad, *hh)

    return h_all[:, :batch, :hidden_dim]


# ----------------------------------------------------------------------------
# Pure-JAX reference (mirrors the torch forward, unfused weights)
# ----------------------------------------------------------------------------
def mygru_reference(x, h, raw, *, n_layer, matmul_dtype=jnp.float32):
    """matmul_dtype=jnp.bfloat16 reproduces the kernel's MXU input precision."""
    xi_lw, xi_lb, xi_ow, xi_ob, hh_lw, hh_lb, hh_ow, hh_ob = raw

    def dot(a, b):
        return jnp.dot(a.astype(matmul_dtype), b.astype(matmul_dtype),
                       preferred_element_type=jnp.float32)

    def funcsgru(v, lw, lb, ow, ob, g):
        for l in range(n_layer):
            v = jnp.maximum(dot(v, lw[g, l]) + lb[g, l], 0.0)
        return dot(v, ow[g]) + ob[g]

    g_ir = funcsgru(x, xi_lw, xi_lb, xi_ow, xi_ob, 0)
    g_iz = funcsgru(x, xi_lw, xi_lb, xi_ow, xi_ob, 1)
    g_in = funcsgru(x, xi_lw, xi_lb, xi_ow, xi_ob, 2)
    g_hr = funcsgru(h, hh_lw, hh_lb, hh_ow, hh_ob, 0)
    g_hz = funcsgru(h, hh_lw, hh_lb, hh_ow, hh_ob, 1)
    g_hn = funcsgru(h, hh_lw, hh_lb, hh_ow, hh_ob, 2)

    r_t = jax.nn.sigmoid(g_ir + g_hr)
    z_t = jax.nn.sigmoid(g_iz + g_hz)
    n_t = jnp.tanh(g_in + g_hn * r_t)
    return (1.0 - z_t) * n_t + z_t * h


if __name__ == "__main__":
    n_layer = 2
    batch = 8
    input_dim = 64
    hidden_dim = 32
    T = 6

    key = jax.random.PRNGKey(0)
    k_param, k_x, k_h, k_xs = jax.random.split(key, 4)

    raw = init_mygru_raw_params(k_param, n_layer, input_dim, hidden_dim)
    packed = pack_mygru_params(raw, n_layer=n_layer, input_dim=input_dim,
                               hidden_dim=hidden_dim)

    x = jax.random.normal(k_x, (batch, input_dim), jnp.float32)
    h = jax.random.normal(k_h, (batch, hidden_dim), jnp.float32)

    # --- single step (module-faithful forward) ------------------------------
    h_t = mygru_forward(x, h, packed, n_layer=n_layer,
                        input_dim=input_dim, hidden_dim=hidden_dim)
    h_t = jax.block_until_ready(h_t)
    assert h_t.shape == (batch, hidden_dim)

    h_ref_bf16 = mygru_reference(x, h, raw, n_layer=n_layer,
                                 matmul_dtype=jnp.bfloat16)
    assert jnp.allclose(h_t, h_ref_bf16, rtol=2e-3, atol=2e-3), \
        "mismatch vs bf16-matmul reference"
    h_ref_f32 = mygru_reference(x, h, raw, n_layer=n_layer,
                                matmul_dtype=jnp.float32)
    assert jnp.allclose(h_t, h_ref_f32, rtol=0.0, atol=0.25), \
        "mismatch vs f32 reference"

    # --- fused multi-timestep recurrence (perf-optimized call pattern) ------
    xs = jax.random.normal(k_xs, (T, batch, input_dim), jnp.float32)
    h_seq = mygru_forward_seq(xs, h, packed, n_layer=n_layer,
                              input_dim=input_dim, hidden_dim=hidden_dim)
    h_seq = jax.block_until_ready(h_seq)
    assert h_seq.shape == (T, batch, hidden_dim)

    h_cur = h
    refs = []
    for t in range(T):
        h_cur = mygru_reference(xs[t], h_cur, raw, n_layer=n_layer,
                                matmul_dtype=jnp.bfloat16)
        refs.append(h_cur)
    h_seq_ref = jnp.stack(refs, axis=0)
    assert jnp.allclose(h_seq, h_seq_ref, rtol=1e-2, atol=1e-2), \
        "sequence mismatch vs step-by-step bf16 reference"

    print("KERNEL_OK")
</pallas_src>

<mosaic_0001>
module attributes {stable_mosaic.version = 11 : i64} {
  func.func @_mygru_step_kernel(%arg0: i32, %arg1: memref<16x128xbf16, #tpu.memory_space<vmem>>, %arg2: memref<16x128xf32, #tpu.memory_space<vmem>>, %arg3: memref<128x384xbf16, #tpu.memory_space<vmem>>, %arg4: memref<1x384xf32, #tpu.memory_space<vmem>>, %arg5: memref<3x128x128xbf16, #tpu.memory_space<vmem>>, %arg6: memref<3x1x128xf32, #tpu.memory_space<vmem>>, %arg7: memref<3x128x128xbf16, #tpu.memory_space<vmem>>, %arg8: memref<3x1x128xf32, #tpu.memory_space<vmem>>, %arg9: memref<128x384xbf16, #tpu.memory_space<vmem>>, %arg10: memref<1x384xf32, #tpu.memory_space<vmem>>, %arg11: memref<3x128x128xbf16, #tpu.memory_space<vmem>>, %arg12: memref<3x1x128xf32, #tpu.memory_space<vmem>>, %arg13: memref<3x128x128xbf16, #tpu.memory_space<vmem>>, %arg14: memref<3x1x128xf32, #tpu.memory_space<vmem>>, %arg15: memref<16x128xf32, #tpu.memory_space<vmem>>) attributes {dimension_semantics = [#tpu.dimension_semantics<parallel>], iteration_bounds = array<i64: 1>, scalar_prefetch = 0 : i64, scratch_operands = 0 : i64, tpu.core_type = #tpu.core_type<tc>, window_params = [{transform_indices = @transform_0, window_bounds = array<i64: 16, 128>}, {transform_indices = @transform_1, window_bounds = array<i64: 16, 128>}, {pipeline_mode = #tpu.pipeline_mode<synchronous>, transform_indices = @transform_2, window_bounds = array<i64: 128, 384>}, {pipeline_mode = #tpu.pipeline_mode<synchronous>, transform_indices = @transform_3, window_bounds = array<i64: 1, 384>}, {pipeline_mode = #tpu.pipeline_mode<synchronous>, transform_indices = @transform_4, window_bounds = array<i64: 3, 128, 128>}, {pipeline_mode = #tpu.pipeline_mode<synchronous>, transform_indices = @transform_5, window_bounds = array<i64: 3, 1, 128>}, {pipeline_mode = #tpu.pipeline_mode<synchronous>, transform_indices = @transform_6, window_bounds = array<i64: 3, 128, 128>}, {pipeline_mode = #tpu.pipeline_mode<synchronous>, transform_indices = @transform_7, window_bounds = array<i64: 3, 1, 128>}, {pipeline_mode = #tpu.pipeline_mode<synchronous>, transform_indices = @transform_8, window_bounds = array<i64: 128, 384>}, {pipeline_mode = #tpu.pipeline_mode<synchronous>, transform_indices = @transform_9, window_bounds = array<i64: 1, 384>}, {pipeline_mode = #tpu.pipeline_mode<synchronous>, transform_indices = @transform_10, window_bounds = array<i64: 3, 128, 128>}, {pipeline_mode = #tpu.pipeline_mode<synchronous>, transform_indices = @transform_11, window_bounds = array<i64: 3, 1, 128>}, {pipeline_mode = #tpu.pipeline_mode<synchronous>, transform_indices = @transform_12, window_bounds = array<i64: 3, 128, 128>}, {pipeline_mode = #tpu.pipeline_mode<synchronous>, transform_indices = @transform_13, window_bounds = array<i64: 3, 1, 128>}, {transform_indices = @transform_14, window_bounds = array<i64: 16, 128>}]} {
    %c0 = arith.constant 0 : index
    %c0_0 = arith.constant 0 : index
    %0 = vector.load %arg2[%c0, %c0_0] : memref<16x128xf32, #tpu.memory_space<vmem>>, vector<16x128xf32>
    %c0_1 = arith.constant 0 : index
    %c0_2 = arith.constant 0 : index
    %1 = vector.load %arg1[%c0_1, %c0_2] : memref<16x128xbf16, #tpu.memory_space<vmem>>, vector<16x128xbf16>
    %c0_3 = arith.constant 0 : index
    %c0_4 = arith.constant 0 : index
    %2 = vector.load %arg3[%c0_3, %c0_4] : memref<128x384xbf16, #tpu.memory_space<vmem>>, vector<128x384xbf16>
    %cst = arith.constant dense<0.000000e+00> : vector<16x384xf32>
    %3 = tpu.matmul %1, %2, %cst {dimension_numbers = #tpu.dot_dimension_numbers<[1], [0], [0], [1], [0, 0, 1, 1], [], []>} : vector<16x128xbf16>, vector<128x384xbf16>, vector<16x384xf32> -> vector<16x384xf32>
    %c0_5 = arith.constant 0 : index
    %c0_6 = arith.constant 0 : index
    %4 = vector.load %arg4[%c0_5, %c0_6] : memref<1x384xf32, #tpu.memory_space<vmem>>, vector<1x384xf32>
    %5 = vector.broadcast %4 : vector<1x384xf32> to vector<16x384xf32>
    %6 = arith.addf %3, %5 : vector<16x384xf32>
    %cst_7 = arith.constant 0.000000e+00 : f32
    %7 = vector.broadcast %cst_7 : f32 to vector<16x384xf32>
    %8 = arith.maximumf %6, %7 : vector<16x384xf32>
    %9 = arith.truncf %8 : vector<16x384xf32> to vector<16x384xbf16>
    %10 = arith.truncf %0 : vector<16x128xf32> to vector<16x128xbf16>
    %c0_8 = arith.constant 0 : index
    %c0_9 = arith.constant 0 : index
    %11 = vector.load %arg9[%c0_8, %c0_9] : memref<128x384xbf16, #tpu.memory_space<vmem>>, vector<128x384xbf16>
    %cst_10 = arith.constant dense<0.000000e+00> : vector<16x384xf32>
    %12 = tpu.matmul %10, %11, %cst_10 {dimension_numbers = #tpu.dot_dimension_numbers<[1], [0], [0], [1], [0, 0, 1, 1], [], []>} : vector<16x128xbf16>, vector<128x384xbf16>, vector<16x384xf32> -> vector<16x384xf32>
    %c0_11 = arith.constant 0 : index
    %c0_12 = arith.constant 0 : index
    %13 = vector.load %arg10[%c0_11, %c0_12] : memref<1x384xf32, #tpu.memory_space<vmem>>, vector<1x384xf32>
    %14 = vector.broadcast %13 : vector<1x384xf32> to vector<16x384xf32>
    %15 = arith.addf %12, %14 : vector<16x384xf32>
    %cst_13 = arith.constant 0.000000e+00 : f32
    %16 = vector.broadcast %cst_13 : f32 to vector<16x384xf32>
    %17 = arith.maximumf %15, %16 : vector<16x384xf32>
    %18 = arith.truncf %17 : vector<16x384xf32> to vector<16x384xbf16>
    %19 = vector.extract_strided_slice %9 {offsets = [0, 0], sizes = [16, 128], strides = [1, 1]} : vector<16x384xbf16> to vector<16x128xbf16>
    %c0_14 = arith.constant 0 : index
    %c0_15 = arith.constant 0 : index
    %c0_16 = arith.constant 0 : index
    %20 = vector.load %arg5[%c0_14, %c0_15, %c0_16] : memref<3x128x128xbf16, #tpu.memory_space<vmem>>, vector<1x128x128xbf16>
    %21 = vector.shape_cast %20 : vector<1x128x128xbf16> to vector<128x128xbf16>
    %cst_17 = arith.constant dense<0.000000e+00> : vector<16x128xf32>
    %22 = tpu.matmul %19, %21, %cst_17 {dimension_numbers = #tpu.dot_dimension_numbers<[1], [0], [0], [1], [0, 0, 1, 1], [], []>} : vector<16x128xbf16>, vector<128x128xbf16>, vector<16x128xf32> -> vector<16x128xf32>
    %c0_18 = arith.constant 0 : index
    %c0_19 = arith.constant 0 : index
    %c0_20 = arith.constant 0 : index
    %23 = vector.load %arg6[%c0_18, %c0_19, %c0_20] : memref<3x1x128xf32, #tpu.memory_space<vmem>>, vector<1x1x128xf32>
    %24 = vector.shape_cast %23 : vector<1x1x128xf32> to vector<1x128xf32>
    %25 = vector.broadcast %24 : vector<1x128xf32> to vector<16x128xf32>
    %26 = arith.addf %22, %25 : vector<16x128xf32>
    %cst_21 = arith.constant 0.000000e+00 : f32
    %27 = vector.broadcast %cst_21 : f32 to vector<16x128xf32>
    %28 = arith.maximumf %26, %27 : vector<16x128xf32>
    %29 = arith.truncf %28 : vector<16x128xf32> to vector<16x128xbf16>
    %c0_22 = arith.constant 0 : index
    %c0_23 = arith.constant 0 : index
    %c0_24 = arith.constant 0 : index
    %30 = vector.load %arg7[%c0_22, %c0_23, %c0_24] : memref<3x128x128xbf16, #tpu.memory_space<vmem>>, vector<1x128x128xbf16>
    %31 = vector.shape_cast %30 : vector<1x128x128xbf16> to vector<128x128xbf16>
    %cst_25 = arith.constant dense<0.000000e+00> : vector<16x128xf32>
    %32 = tpu.matmul %29, %31, %cst_25 {dimension_numbers = #tpu.dot_dimension_numbers<[1], [0], [0], [1], [0, 0, 1, 1], [], []>} : vector<16x128xbf16>, vector<128x128xbf16>, vector<16x128xf32> -> vector<16x128xf32>
    %c0_26 = arith.constant 0 : index
    %c0_27 = arith.constant 0 : index
    %c0_28 = arith.constant 0 : index
    %33 = vector.load %arg8[%c0_26, %c0_27, %c0_28] : memref<3x1x128xf32, #tpu.memory_space<vmem>>, vector<1x1x128xf32>
    %34 = vector.shape_cast %33 : vector<1x1x128xf32> to vector<1x128xf32>
    %35 = vector.broadcast %34 : vector<1x128xf32> to vector<16x128xf32>
    %36 = arith.addf %32, %35 : vector<16x128xf32>
    %37 = vector.extract_strided_slice %18 {offsets = [0, 0], sizes = [16, 128], strides = [1, 1]} : vector<16x384xbf16> to vector<16x128xbf16>
    %c0_29 = arith.constant 0 : index
    %c0_30 = arith.constant 0 : index
    %c0_31 = arith.constant 0 : index
    %38 = vector.load %arg11[%c0_29, %c0_30, %c0_31] : memref<3x128x128xbf16, #tpu.memory_space<vmem>>, vector<1x128x128xbf16>
    %39 = vector.shape_cast %38 : vector<1x128x128xbf16> to vector<128x128xbf16>
    %cst_32 = arith.constant dense<0.000000e+00> : vector<16x128xf32>
    %40 = tpu.matmul %37, %39, %cst_32 {dimension_numbers = #tpu.dot_dimension_numbers<[1], [0], [0], [1], [0, 0, 1, 1], [], []>} : vector<16x128xbf16>, vector<128x128xbf16>, vector<16x128xf32> -> vector<16x128xf32>
    %c0_33 = arith.constant 0 : index
    %c0_34 = arith.constant 0 : index
    %c0_35 = arith.constant 0 : index
    %41 = vector.load %arg12[%c0_33, %c0_34, %c0_35] : memref<3x1x128xf32, #tpu.memory_space<vmem>>, vector<1x1x128xf32>
    %42 = vector.shape_cast %41 : vector<1x1x128xf32> to vector<1x128xf32>
    %43 = vector.broadcast %42 : vector<1x128xf32> to vector<16x128xf32>
    %44 = arith.addf %40, %43 : vector<16x128xf32>
    %cst_36 = arith.constant 0.000000e+00 : f32
    %45 = vector.broadcast %cst_36 : f32 to vector<16x128xf32>
    %46 = arith.maximumf %44, %45 : vector<16x128xf32>
    %47 = arith.truncf %46 : vector<16x128xf32> to vector<16x128xbf16>
    %c0_37 = arith.constant 0 : index
    %c0_38 = arith.constant 0 : index
    %c0_39 = arith.constant 0 : index
    %48 = vector.load %arg13[%c0_37, %c0_38, %c0_39] : memref<3x128x128xbf16, #tpu.memory_space<vmem>>, vector<1x128x128xbf16>
    %49 = vector.shape_cast %48 : vector<1x128x128xbf16> to vector<128x128xbf16>
    %cst_40 = arith.constant dense<0.000000e+00> : vector<16x128xf32>
    %50 = tpu.matmul %47, %49, %cst_40 {dimension_numbers = #tpu.dot_dimension_numbers<[1], [0], [0], [1], [0, 0, 1, 1], [], []>} : vector<16x128xbf16>, vector<128x128xbf16>, vector<16x128xf32> -> vector<16x128xf32>
    %c0_41 = arith.constant 0 : index
    %c0_42 = arith.constant 0 : index
    %c0_43 = arith.constant 0 : index
    %51 = vector.load %arg14[%c0_41, %c0_42, %c0_43] : memref<3x1x128xf32, #tpu.memory_space<vmem>>, vector<1x1x128xf32>
    %52 = vector.shape_cast %51 : vector<1x1x128xf32> to vector<1x128xf32>
    %53 = vector.broadcast %52 : vector<1x128xf32> to vector<16x128xf32>
    %54 = arith.addf %50, %53 : vector<16x128xf32>
    %55 = arith.addf %36, %54 : vector<16x128xf32>
    %56 = arith.negf %55 : vector<16x128xf32>
    %57 = math.exp %56 : vector<16x128xf32>
    %cst_44 = arith.constant 1.000000e+00 : f32
    %58 = vector.broadcast %cst_44 : f32 to vector<16x128xf32>
    %59 = arith.addf %58, %57 : vector<16x128xf32>
    %60 = arith.divf %58, %59 : vector<16x128xf32>
    %61 = vector.extract_strided_slice %9 {offsets = [0, 128], sizes = [16, 128], strides = [1, 1]} : vector<16x384xbf16> to vector<16x128xbf16>
    %c1 = arith.constant 1 : index
    %c0_45 = arith.constant 0 : index
    %c0_46 = arith.constant 0 : index
    %62 = vector.load %arg5[%c1, %c0_45, %c0_46] : memref<3x128x128xbf16, #tpu.memory_space<vmem>>, vector<1x128x128xbf16>
    %63 = vector.shape_cast %62 : vector<1x128x128xbf16> to vector<128x128xbf16>
    %cst_47 = arith.constant dense<0.000000e+00> : vector<16x128xf32>
    %64 = tpu.matmul %61, %63, %cst_47 {dimension_numbers = #tpu.dot_dimension_numbers<[1], [0], [0], [1], [0, 0, 1, 1], [], []>} : vector<16x128xbf16>, vector<128x128xbf16>, vector<16x128xf32> -> vector<16x128xf32>
    %c1_48 = arith.constant 1 : index
    %c0_49 = arith.constant 0 : index
    %c0_50 = arith.constant 0 : index
    %65 = vector.load %arg6[%c1_48, %c0_49, %c0_50] : memref<3x1x128xf32, #tpu.memory_space<vmem>>, vector<1x1x128xf32>
    %66 = vector.shape_cast %65 : vector<1x1x128xf32> to vector<1x128xf32>
    %67 = vector.broadcast %66 : vector<1x128xf32> to vector<16x128xf32>
    %68 = arith.addf %64, %67 : vector<16x128xf32>
    %cst_51 = arith.constant 0.000000e+00 : f32
    %69 = vector.broadcast %cst_51 : f32 to vector<16x128xf32>
    %70 = arith.maximumf %68, %69 : vector<16x128xf32>
    %71 = arith.truncf %70 : vector<16x128xf32> to vector<16x128xbf16>
    %c1_52 = arith.constant 1 : index
    %c0_53 = arith.constant 0 : index
    %c0_54 = arith.constant 0 : index
    %72 = vector.load %arg7[%c1_52, %c0_53, %c0_54] : memref<3x128x128xbf16, #tpu.memory_space<vmem>>, vector<1x128x128xbf16>
    %73 = vector.shape_cast %72 : vector<1x128x128xbf16> to vector<128x128xbf16>
    %cst_55 = arith.constant dense<0.000000e+00> : vector<16x128xf32>
    %74 = tpu.matmul %71, %73, %cst_55 {dimension_numbers = #tpu.dot_dimension_numbers<[1], [0], [0], [1], [0, 0, 1, 1], [], []>} : vector<16x128xbf16>, vector<128x128xbf16>, vector<16x128xf32> -> vector<16x128xf32>
    %c1_56 = arith.constant 1 : index
    %c0_57 = arith.constant 0 : index
    %c0_58 = arith.constant 0 : index
    %75 = vector.load %arg8[%c1_56, %c0_57, %c0_58] : memref<3x1x128xf32, #tpu.memory_space<vmem>>, vector<1x1x128xf32>
    %76 = vector.shape_cast %75 : vector<1x1x128xf32> to vector<1x128xf32>
    %77 = vector.broadcast %76 : vector<1x128xf32> to vector<16x128xf32>
    %78 = arith.addf %74, %77 : vector<16x128xf32>
    %79 = vector.extract_strided_slice %18 {offsets = [0, 128], sizes = [16, 128], strides = [1, 1]} : vector<16x384xbf16> to vector<16x128xbf16>
    %c1_59 = arith.constant 1 : index
    %c0_60 = arith.constant 0 : index
    %c0_61 = arith.constant 0 : index
    %80 = vector.load %arg11[%c1_59, %c0_60, %c0_61] : memref<3x128x128xbf16, #tpu.memory_space<vmem>>, vector<1x128x128xbf16>
    %81 = vector.shape_cast %80 : vector<1x128x128xbf16> to vector<128x128xbf16>
    %cst_62 = arith.constant dense<0.000000e+00> : vector<16x128xf32>
    %82 = tpu.matmul %79, %81, %cst_62 {dimension_numbers = #tpu.dot_dimension_numbers<[1], [0], [0], [1], [0, 0, 1, 1], [], []>} : vector<16x128xbf16>, vector<128x128xbf16>, vector<16x128xf32> -> vector<16x128xf32>
    %c1_63 = arith.constant 1 : index
    %c0_64 = arith.constant 0 : index
    %c0_65 = arith.constant 0 : index
    %83 = vector.load %arg12[%c1_63, %c0_64, %c0_65] : memref<3x1x128xf32, #tpu.memory_space<vmem>>, vector<1x1x128xf32>
    %84 = vector.shape_cast %83 : vector<1x1x128xf32> to vector<1x128xf32>
    %85 = vector.broadcast %84 : vector<1x128xf32> to vector<16x128xf32>
    %86 = arith.addf %82, %85 : vector<16x128xf32>
    %cst_66 = arith.constant 0.000000e+00 : f32
    %87 = vector.broadcast %cst_66 : f32 to vector<16x128xf32>
    %88 = arith.maximumf %86, %87 : vector<16x128xf32>
    %89 = arith.truncf %88 : vector<16x128xf32> to vector<16x128xbf16>
    %c1_67 = arith.constant 1 : index
    %c0_68 = arith.constant 0 : index
    %c0_69 = arith.constant 0 : index
    %90 = vector.load %arg13[%c1_67, %c0_68, %c0_69] : memref<3x128x128xbf16, #tpu.memory_space<vmem>>, vector<1x128x128xbf16>
    %91 = vector.shape_cast %90 : vector<1x128x128xbf16> to vector<128x128xbf16>
    %cst_70 = arith.constant dense<0.000000e+00> : vector<16x128xf32>
    %92 = tpu.matmul %89, %91, %cst_70 {dimension_numbers = #tpu.dot_dimension_numbers<[1], [0], [0], [1], [0, 0, 1, 1], [], []>} : vector<16x128xbf16>, vector<128x128xbf16>, vector<16x128xf32> -> vector<16x128xf32>
    %c1_71 = arith.constant 1 : index
    %c0_72 = arith.constant 0 : index
    %c0_73 = arith.constant 0 : index
    %93 = vector.load %arg14[%c1_71, %c0_72, %c0_73] : memref<3x1x128xf32, #tpu.memory_space<vmem>>, vector<1x1x128xf32>
    %94 = vector.shape_cast %93 : vector<1x1x128xf32> to vector<1x128xf32>
    %95 = vector.broadcast %94 : vector<1x128xf32> to vector<16x128xf32>
    %96 = arith.addf %92, %95 : vector<16x128xf32>
    %97 = arith.addf %78, %96 : vector<16x128xf32>
    %98 = arith.negf %97 : vector<16x128xf32>
    %99 = math.exp %98 : vector<16x128xf32>
    %cst_74 = arith.constant 1.000000e+00 : f32
    %100 = vector.broadcast %cst_74 : f32 to vector<16x128xf32>
    %101 = arith.addf %100, %99 : vector<16x128xf32>
    %102 = arith.divf %100, %101 : vector<16x128xf32>
    %103 = vector.extract_strided_slice %9 {offsets = [0, 256], sizes = [16, 128], strides = [1, 1]} : vector<16x384xbf16> to vector<16x128xbf16>
    %c2 = arith.constant 2 : index
    %c0_75 = arith.constant 0 : index
    %c0_76 = arith.constant 0 : index
    %104 = vector.load %arg5[%c2, %c0_75, %c0_76] : memref<3x128x128xbf16, #tpu.memory_space<vmem>>, vector<1x128x128xbf16>
    %105 = vector.shape_cast %104 : vector<1x128x128xbf16> to vector<128x128xbf16>
    %cst_77 = arith.constant dense<0.000000e+00> : vector<16x128xf32>
    %106 = tpu.matmul %103, %105, %cst_77 {dimension_numbers = #tpu.dot_dimension_numbers<[1], [0], [0], [1], [0, 0, 1, 1], [], []>} : vector<16x128xbf16>, vector<128x128xbf16>, vector<16x128xf32> -> vector<16x128xf32>
    %c2_78 = arith.constant 2 : index
    %c0_79 = arith.constant 0 : index
    %c0_80 = arith.constant 0 : index
    %107 = vector.load %arg6[%c2_78, %c0_79, %c0_80] : memref<3x1x128xf32, #tpu.memory_space<vmem>>, vector<1x1x128xf32>
    %108 = vector.shape_cast %107 : vector<1x1x128xf32> to vector<1x128xf32>
    %109 = vector.broadcast %108 : vector<1x128xf32> to vector<16x128xf32>
    %110 = arith.addf %106, %109 : vector<16x128xf32>
    %cst_81 = arith.constant 0.000000e+00 : f32
    %111 = vector.broadcast %cst_81 : f32 to vector<16x128xf32>
    %112 = arith.maximumf %110, %111 : vector<16x128xf32>
    %113 = arith.truncf %112 : vector<16x128xf32> to vector<16x128xbf16>
    %c2_82 = arith.constant 2 : index
    %c0_83 = arith.constant 0 : index
    %c0_84 = arith.constant 0 : index
    %114 = vector.load %arg7[%c2_82, %c0_83, %c0_84] : memref<3x128x128xbf16, #tpu.memory_space<vmem>>, vector<1x128x128xbf16>
    %115 = vector.shape_cast %114 : vector<1x128x128xbf16> to vector<128x128xbf16>
    %cst_85 = arith.constant dense<0.000000e+00> : vector<16x128xf32>
    %116 = tpu.matmul %113, %115, %cst_85 {dimension_numbers = #tpu.dot_dimension_numbers<[1], [0], [0], [1], [0, 0, 1, 1], [], []>} : vector<16x128xbf16>, vector<128x128xbf16>, vector<16x128xf32> -> vector<16x128xf32>
    %c2_86 = arith.constant 2 : index
    %c0_87 = arith.constant 0 : index
    %c0_88 = arith.constant 0 : index
    %117 = vector.load %arg8[%c2_86, %c0_87, %c0_88] : memref<3x1x128xf32, #tpu.memory_space<vmem>>, vector<1x1x128xf32>
    %118 = vector.shape_cast %117 : vector<1x1x128xf32> to vector<1x128xf32>
    %119 = vector.broadcast %118 : vector<1x128xf32> to vector<16x128xf32>
    %120 = arith.addf %116, %119 : vector<16x128xf32>
    %121 = vector.extract_strided_slice %18 {offsets = [0, 256], sizes = [16, 128], strides = [1, 1]} : vector<16x384xbf16> to vector<16x128xbf16>
    %c2_89 = arith.constant 2 : index
    %c0_90 = arith.constant 0 : index
    %c0_91 = arith.constant 0 : index
    %122 = vector.load %arg11[%c2_89, %c0_90, %c0_91] : memref<3x128x128xbf16, #tpu.memory_space<vmem>>, vector<1x128x128xbf16>
    %123 = vector.shape_cast %122 : vector<1x128x128xbf16> to vector<128x128xbf16>
    %cst_92 = arith.constant dense<0.000000e+00> : vector<16x128xf32>
    %124 = tpu.matmul %121, %123, %cst_92 {dimension_numbers = #tpu.dot_dimension_numbers<[1], [0], [0], [1], [0, 0, 1, 1], [], []>} : vector<16x128xbf16>, vector<128x128xbf16>, vector<16x128xf32> -> vector<16x128xf32>
    %c2_93 = arith.constant 2 : index
    %c0_94 = arith.constant 0 : index
    %c0_95 = arith.constant 0 : index
    %125 = vector.load %arg12[%c2_93, %c0_94, %c0_95] : memref<3x1x128xf32, #tpu.memory_space<vmem>>, vector<1x1x128xf32>
    %126 = vector.shape_cast %125 : vector<1x1x128xf32> to vector<1x128xf32>
    %127 = vector.broadcast %126 : vector<1x128xf32> to vector<16x128xf32>
    %128 = arith.addf %124, %127 : vector<16x128xf32>
    %cst_96 = arith.constant 0.000000e+00 : f32
    %129 = vector.broadcast %cst_96 : f32 to vector<16x128xf32>
    %130 = arith.maximumf %128, %129 : vector<16x128xf32>
    %131 = arith.truncf %130 : vector<16x128xf32> to vector<16x128xbf16>
    %c2_97 = arith.constant 2 : index
    %c0_98 = arith.constant 0 : index
    %c0_99 = arith.constant 0 : index
    %132 = vector.load %arg13[%c2_97, %c0_98, %c0_99] : memref<3x128x128xbf16, #tpu.memory_space<vmem>>, vector<1x128x128xbf16>
    %133 = vector.shape_cast %132 : vector<1x128x128xbf16> to vector<128x128xbf16>
    %cst_100 = arith.constant dense<0.000000e+00> : vector<16x128xf32>
    %134 = tpu.matmul %131, %133, %cst_100 {dimension_numbers = #tpu.dot_dimension_numbers<[1], [0], [0], [1], [0, 0, 1, 1], [], []>} : vector<16x128xbf16>, vector<128x128xbf16>, vector<16x128xf32> -> vector<16x128xf32>
    %c2_101 = arith.constant 2 : index
    %c0_102 = arith.constant 0 : index
    %c0_103 = arith.constant 0 : index
    %135 = vector.load %arg14[%c2_101, %c0_102, %c0_103] : memref<3x1x128xf32, #tpu.memory_space<vmem>>, vector<1x1x128xf32>
    %136 = vector.shape_cast %135 : vector<1x1x128xf32> to vector<1x128xf32>
    %137 = vector.broadcast %136 : vector<1x128xf32> to vector<16x128xf32>
    %138 = arith.addf %134, %137 : vector<16x128xf32>
    %139 = arith.mulf %138, %60 : vector<16x128xf32>
    %140 = arith.addf %120, %139 : vector<16x128xf32>
    %141 = math.tanh %140 : vector<16x128xf32>
    %cst_104 = arith.constant 1.000000e+00 : f32
    %142 = vector.broadcast %cst_104 : f32 to vector<16x128xf32>
    %143 = arith.subf %142, %102 : vector<16x128xf32>
    %144 = arith.mulf %143, %141 : vector<16x128xf32>
    %145 = arith.mulf %102, %0 : vector<16x128xf32>
    %146 = arith.addf %144, %145 : vector<16x128xf32>
    %c0_105 = arith.constant 0 : index
    %c0_106 = arith.constant 0 : index
    %147 = vector.load %arg15[%c0_105, %c0_106] : memref<16x128xf32, #tpu.memory_space<vmem>>, vector<16x128xf32>
    tpu.vector_store %arg15[%c0_105, %c0_106], %146 {strides = array<i32>} : memref<16x128xf32, #tpu.memory_space<vmem>>, vector<16x128xf32>,
    return
  }
  func.func @transform_0(%arg0: i32) -> (i32, i32) {
    %c0_i32 = arith.constant 0 : i32
    %c0_i32_0 = arith.constant 0 : i32
    return %arg0, %c0_i32 : i32, i32
  }
  func.func @transform_1(%arg0: i32) -> (i32, i32) {
    %c0_i32 = arith.constant 0 : i32
    %c0_i32_0 = arith.constant 0 : i32
    return %arg0, %c0_i32 : i32, i32
  }
  func.func @transform_2(%arg0: i32) -> (i32, i32) {
    %c0_i32 = arith.constant 0 : i32
    %c0_i32_0 = arith.constant 0 : i32
    %c0_i32_1 = arith.constant 0 : i32
    return %c0_i32, %c0_i32_0 : i32, i32
  }
  func.func @transform_3(%arg0: i32) -> (i32, i32) {
    %c0_i32 = arith.constant 0 : i32
    %c0_i32_0 = arith.constant 0 : i32
    %c0_i32_1 = arith.constant 0 : i32
    return %c0_i32, %c0_i32_0 : i32, i32
  }
  func.func @transform_4(%arg0: i32) -> (i32, i32, i32) {
    %c0_i32 = arith.constant 0 : i32
    %c0_i32_0 = arith.constant 0 : i32
    %c0_i32_1 = arith.constant 0 : i32
    %c0_i32_2 = arith.constant 0 : i32
    return %c0_i32, %c0_i32_0, %c0_i32_1 : i32, i32, i32
  }
  func.func @transform_5(%arg0: i32) -> (i32, i32, i32) {
    %c0_i32 = arith.constant 0 : i32
    %c0_i32_0 = arith.constant 0 : i32
    %c0_i32_1 = arith.constant 0 : i32
    %c0_i32_2 = arith.constant 0 : i32
    return %c0_i32, %c0_i32_0, %c0_i32_1 : i32, i32, i32
  }
  func.func @transform_6(%arg0: i32) -> (i32, i32, i32) {
    %c0_i32 = arith.constant 0 : i32
    %c0_i32_0 = arith.constant 0 : i32
    %c0_i32_1 = arith.constant 0 : i32
    %c0_i32_2 = arith.constant 0 : i32
    return %c0_i32, %c0_i32_0, %c0_i32_1 : i32, i32, i32
  }
  func.func @transform_7(%arg0: i32) -> (i32, i32, i32) {
    %c0_i32 = arith.constant 0 : i32
    %c0_i32_0 = arith.constant 0 : i32
    %c0_i32_1 = arith.constant 0 : i32
    %c0_i32_2 = arith.constant 0 : i32
    return %c0_i32, %c0_i32_0, %c0_i32_1 : i32, i32, i32
  }
  func.func @transform_8(%arg0: i32) -> (i32, i32) {
    %c0_i32 = arith.constant 0 : i32
    %c0_i32_0 = arith.constant 0 : i32
    %c0_i32_1 = arith.constant 0 : i32
    return %c0_i32, %c0_i32_0 : i32, i32
  }
  func.func @transform_9(%arg0: i32) -> (i32, i32) {
    %c0_i32 = arith.constant 0 : i32
    %c0_i32_0 = arith.constant 0 : i32
    %c0_i32_1 = arith.constant 0 : i32
    return %c0_i32, %c0_i32_0 : i32, i32
  }
  func.func @transform_10(%arg0: i32) -> (i32, i32, i32) {
    %c0_i32 = arith.constant 0 : i32
    %c0_i32_0 = arith.constant 0 : i32
    %c0_i32_1 = arith.constant 0 : i32
    %c0_i32_2 = arith.constant 0 : i32
    return %c0_i32, %c0_i32_0, %c0_i32_1 : i32, i32, i32
  }
  func.func @transform_11(%arg0: i32) -> (i32, i32, i32) {
    %c0_i32 = arith.constant 0 : i32
    %c0_i32_0 = arith.constant 0 : i32
    %c0_i32_1 = arith.constant 0 : i32
    %c0_i32_2 = arith.constant 0 : i32
    return %c0_i32, %c0_i32_0, %c0_i32_1 : i32, i32, i32
  }
  func.func @transform_12(%arg0: i32) -> (i32, i32, i32) {
    %c0_i32 = arith.constant 0 : i32
    %c0_i32_0 = arith.constant 0 : i32
    %c0_i32_1 = arith.constant 0 : i32
    %c0_i32_2 = arith.constant 0 : i32
    return %c0_i32, %c0_i32_0, %c0_i32_1 : i32, i32, i32
  }
  func.func @transform_13(%arg0: i32) -> (i32, i32, i32) {
    %c0_i32 = arith.constant 0 : i32
    %c0_i32_0 = arith.constant 0 : i32
    %c0_i32_1 = arith.constant 0 : i32
    %c0_i32_2 = arith.constant 0 : i32
    return %c0_i32, %c0_i32_0, %c0_i32_1 : i32, i32, i32
  }
  func.func @transform_14(%arg0: i32) -> (i32, i32) {
    %c0_i32 = arith.constant 0 : i32
    %c0_i32_0 = arith.constant 0 : i32
    return %arg0, %c0_i32 : i32, i32
  }
}

</mosaic_0001>

<llo_original>
// kernel: tpu_custom_call.1
$region0: #{tpu_custom_call.1}
  #allocation0 [shape = 'u32[]', space=smem, size = 0x4, offset = 0x4, fixed_abs, tag = 'smem constant byte address 0x4 - core index']
  #allocation1 [shape = 'u32[144,128]{1,0:T(1,128)}', space=vmem, size = 0x12000, scoped, tag = 'internal scratch']
  %s0 = inlined_call_operand.hbm [shape: bf16[16,128], index: 0, kind: input, shape index: {}]
  %s1 = inlined_call_operand.hbm [shape: f32[16,128], index: 1, kind: input, shape index: {}]
  %s2 = inlined_call_operand.hbm [shape: bf16[128,384], index: 2, kind: input, shape index: {}]
  %s3 = inlined_call_operand.vmem [shape: f32[1,384], index: 3, kind: input, shape index: {}]
  %s4 = inlined_call_operand.hbm [shape: bf16[3,128,128], index: 4, kind: input, shape index: {}]
  %s5 = inlined_call_operand.vmem [shape: f32[3,1,128], index: 5, kind: input, shape index: {}]
  %s6 = inlined_call_operand.hbm [shape: bf16[3,128,128], index: 6, kind: input, shape index: {}]
  %s7 = inlined_call_operand.vmem [shape: f32[3,1,128], index: 7, kind: input, shape index: {}]
  %s8 = inlined_call_operand.hbm [shape: bf16[128,384], index: 8, kind: input, shape index: {}]
  %s9 = inlined_call_operand.vmem [shape: f32[1,384], index: 9, kind: input, shape index: {}]
  %s10 = inlined_call_operand.hbm [shape: bf16[3,128,128], index: 10, kind: input, shape index: {}]
  %s11 = inlined_call_operand.vmem [shape: f32[3,1,128], index: 11, kind: input, shape index: {}]
  %s12 = inlined_call_operand.hbm [shape: bf16[3,128,128], index: 12, kind: input, shape index: {}]
  %s13 = inlined_call_operand.vmem [shape: f32[3,1,128], index: 13, kind: input, shape index: {}]
  %s14 = inlined_call_operand.hbm [shape: f32[16,128], index: 14, kind: output, shape index: {}]
  %s15 = sld [smem:[#allocation0]]
  $region98: #{tpu_custom_call.1} parent=0
    _
  %s17 = ssub.s32 1, %s15
  %s18 = scalar_select 0, %s17, %s15
  $region1: #{tpu_custom_call.1} parent=0
    #allocation2 [shape = 'u8[4096]{0}', space=vmem, size = 0x1000, scoped, tag = 'input window, operand 0, single buffered']
    #allocation3 [shape = 's32[1]{0}', space=sflag, size = 0x4, scoped, tag = 'scoped memory for tpu_custom_call.1']
    #allocation4 [shape = 's32[1]{0}', space=sflag, size = 0x4, scoped, tag = 'scoped memory for tpu_custom_call.1']
    #allocation5 [shape = 'u8[8192]{0}', space=vmem, size = 0x2000, scoped, tag = 'input window, operand 1, single buffered']
    #allocation6 [shape = 's32[1]{0}', space=sflag, size = 0x4, scoped, tag = 'scoped memory for tpu_custom_call.1']
    #allocation7 [shape = 'u8[98304]{0}', space=vmem, size = 0x18000, scoped, tag = 'input window, operand 2, single buffered']
    #allocation8 [shape = 'u8[98304]{0}', space=vmem, size = 0x18000, scoped, tag = 'input window, operand 4, single buffered']
    #allocation9 [shape = 's32[1]{0}', space=sflag, size = 0x4, scoped, tag = 'scoped memory for tpu_custom_call.1']
    #allocation10 [shape = 'u8[98304]{0}', space=vmem, size = 0x18000, scoped, tag = 'input window, operand 6, single buffered']
    #allocation11 [shape = 'u8[98304]{0}', space=vmem, size = 0x18000, scoped, tag = 'input window, operand 8, single buffered']
    #allocation12 [shape = 's32[1]{0}', space=sflag, size = 0x4, scoped, tag = 'scoped memory for tpu_custom_call.1']
    #allocation13 [shape = 'u8[98304]{0}', space=vmem, size = 0x18000, scoped, tag = 'input window, operand 10, single buffered']
    #allocation14 [shape = 'u8[98304]{0}', space=vmem, size = 0x18000, scoped, tag = 'input window, operand 12, single buffered']
    #allocation15 [shape = 's32[1]{0}', space=sflag, size = 0x4, scoped, tag = 'scoped memory for tpu_custom_call.1']
    #allocation16 [shape = 'u8[8192]{0}', space=vmem, size = 0x2000, scoped, tag = 'output window, operand 0, single buffered']
    %19 = vsyncpa [#allocation3], 0
    %20 = vsyncpa [#allocation6], 0
    %21 = vsyncpa [#allocation9], 0
    %22 = vsyncpa [#allocation12], 0
    %23 = vsyncpa [#allocation15], 0
    %24 = vsyncpa [#allocation4], 0
    // Predicated region
    $region2: #{tpu_custom_call.1} parent=1 // pred_check
      _
    $region3: #{tpu_custom_call.1} parent=1 // pred_check_branch
      %26 = sbr.rel (0) target = $region5
    $region4: #{tpu_custom_call.1} parent=1 // pred_region
      %s28 = ssub.s32 128, 128
      %29 = vsyncadd [#allocation3], %s28
      %s30 = sshll.u32 [#allocation2], 4
      %s31 = int_to_ptr.vmem [resolvable:$true] %s30
      %36 = dma.hbm_to_vmem [thread:$0]  %s0, 128, %s31, [#allocation3], 64, 64, 4
    $region5: #{tpu_custom_call.1} parent=1 // pred_fallthru
      _
    // Predicated region
    $region6: #{tpu_custom_call.1} parent=1 // pred_check
      _
    $region7: #{tpu_custom_call.1} parent=1 // pred_check_branch
      %38 = sbr.rel (0) target = $region9
    $region8: #{tpu_custom_call.1} parent=1 // pred_region
      %s40 = ssub.s32 256, 256
      %41 = vsyncadd [#allocation6], %s40
      %s42 = sshll.u32 [#allocation5], 4
      %s43 = int_to_ptr.vmem [resolvable:$true] %s42
      %48 = dma.hbm_to_vmem [thread:$0]  %s1, 256, %s43, [#allocation6], 128, 128, 8
    $region9: #{tpu_custom_call.1} parent=1 // pred_fallthru
      _
    // Predicated region
    $region10: #{tpu_custom_call.1} parent=1 // pred_check
      _
    $region11: #{tpu_custom_call.1} parent=1 // pred_check_branch
      %50 = sbr.rel (0) target = $region13
    $region12: #{tpu_custom_call.1} parent=1 // pred_region
      %s52 = ssub.s32 3072, 3072
      %53 = vsyncadd [#allocation6], %s52
      %s54 = sshll.u32 [#allocation7], 4
      %s55 = int_to_ptr.vmem [resolvable:$true] %s54
      %60 = dma.hbm_to_vmem [thread:$0]  %s2, 3072, %s55, [#allocation6], 192, 192, 12
    $region13: #{tpu_custom_call.1} parent=1 // pred_fallthru
      _
    // Predicated region
    $region14: #{tpu_custom_call.1} parent=1 // pred_check
      _
    $region15: #{tpu_custom_call.1} parent=1 // pred_check_branch
      %62 = sbr.rel (0) target = $region17
    $region16: #{tpu_custom_call.1} parent=1 // pred_region
      _
    $region17: #{tpu_custom_call.1} parent=1 // pred_fallthru
      _
    // Predicated region
    $region18: #{tpu_custom_call.1} parent=1 // pred_check
      _
    $region19: #{tpu_custom_call.1} parent=1 // pred_check_branch
      %64 = sbr.rel (0) target = $region21
    $region20: #{tpu_custom_call.1} parent=1 // pred_region
      %s66 = ssub.s32 3072, 3072
      %67 = vsyncadd [#allocation9], %s66
      %s68 = sshll.u32 [#allocation8], 4
      %s69 = int_to_ptr.vmem [resolvable:$true] %s68
      %74 = dma.hbm_to_vmem [thread:$0]  %s4, 3072, %s69, [#allocation9], 64, 64, 4
    $region21: #{tpu_custom_call.1} parent=1 // pred_fallthru
      _
    // Predicated region
    $region22: #{tpu_custom_call.1} parent=1 // pred_check
      _
    $region23: #{tpu_custom_call.1} parent=1 // pred_check_branch
      %76 = sbr.rel (0) target = $region25
    $region24: #{tpu_custom_call.1} parent=1 // pred_region
      _
    $region25: #{tpu_custom_call.1} parent=1 // pred_fallthru
      _
    // Predicated region
    $region26: #{tpu_custom_call.1} parent=1 // pred_check
      _
    $region27: #{tpu_custom_call.1} parent=1 // pred_check_branch
      %78 = sbr.rel (0) target = $region29
    $region28: #{tpu_custom_call.1} parent=1 // pred_region
      %s80 = ssub.s32 3072, 3072
      %81 = vsyncadd [#allocation9], %s80
      %s82 = sshll.u32 [#allocation10], 4
      %s83 = int_to_ptr.vmem [resolvable:$true] %s82
      %88 = dma.hbm_to_vmem [thread:$0]  %s6, 3072, %s83, [#allocation9], 64, 64, 4
    $region29: #{tpu_custom_call.1} parent=1 // pred_fallthru
      _
    // Predicated region
    $region30: #{tpu_custom_call.1} parent=1 // pred_check
      _
    $region31: #{tpu_custom_call.1} parent=1 // pred_check_branch
      %90 = sbr.rel (0) target = $region33
    $region32: #{tpu_custom_call.1} parent=1 // pred_region
      _
    $region33: #{tpu_custom_call.1} parent=1 // pred_fallthru
      _
    // Predicated region
    $region34: #{tpu_custom_call.1} parent=1 // pred_check
      _
    $region35: #{tpu_custom_call.1} parent=1 // pred_check_branch
      %92 = sbr.rel (0) target = $region37
    $region36: #{tpu_custom_call.1} parent=1 // pred_region
      %s94 = ssub.s32 3072, 3072
      %95 = vsyncadd [#allocation12], %s94
      %s96 = sshll.u32 [#allocation11], 4
      %s97 = int_to_ptr.vmem [resolvable:$true] %s96
      %102 = dma.hbm_to_vmem [thread:$0]  %s8, 3072, %s97, [#allocation12], 192, 192, 12
    $region37: #{tpu_custom_call.1} parent=1 // pred_fallthru
      _
    // Predicated region
    $region38: #{tpu_custom_call.1} parent=1 // pred_check
      _
    $region39: #{tpu_custom_call.1} parent=1 // pred_check_branch
      %104 = sbr.rel (0) target = $region41
    $region40: #{tpu_custom_call.1} parent=1 // pred_region
      _
    $region41: #{tpu_custom_call.1} parent=1 // pred_fallthru
      _
    // Predicated region
    $region42: #{tpu_custom_call.1} parent=1 // pred_check
      _
    $region43: #{tpu_custom_call.1} parent=1 // pred_check_branch
      %106 = sbr.rel (0) target = $region45
    $region44: #{tpu_custom_call.1} parent=1 // pred_region
      %s108 = ssub.s32 3072, 3072
      %109 = vsyncadd [#allocation12], %s108
      %s110 = sshll.u32 [#allocation13], 4
      %s111 = int_to_ptr.vmem [resolvable:$true] %s110
      %116 = dma.hbm_to_vmem [thread:$0]  %s10, 3072, %s111, [#allocation12], 64, 64, 4
    $region45: #{tpu_custom_call.1} parent=1 // pred_fallthru
      _
    // Predicated region
    $region46: #{tpu_custom_call.1} parent=1 // pred_check
      _
    $region47: #{tpu_custom_call.1} parent=1 // pred_check_branch
      %118 = sbr.rel (0) target = $region49
    $region48: #{tpu_custom_call.1} parent=1 // pred_region
      _
    $region49: #{tpu_custom_call.1} parent=1 // pred_fallthru
      _
    // Predicated region
    $region50: #{tpu_custom_call.1} parent=1 // pred_check
      _
    $region51: #{tpu_custom_call.1} parent=1 // pred_check_branch
      %120 = sbr.rel (0) target = $region53
    $region52: #{tpu_custom_call.1} parent=1 // pred_region
      %s122 = ssub.s32 3072, 3072
      %123 = vsyncadd [#allocation15], %s122
      %s124 = sshll.u32 [#allocation14], 4
      %s125 = int_to_ptr.vmem [resolvable:$true] %s124
      %130 = dma.hbm_to_vmem [thread:$0]  %s12, 3072, %s125, [#allocation15], 64, 64, 4
    $region53: #{tpu_custom_call.1} parent=1 // pred_fallthru
      _
    // Predicated region
    $region54: #{tpu_custom_call.1} parent=1 // pred_check
      _
    $region55: #{tpu_custom_call.1} parent=1 // pred_check_branch
      %132 = sbr.rel (0) target = $region57
    $region56: #{tpu_custom_call.1} parent=1 // pred_region
      _
    $region57: #{tpu_custom_call.1} parent=1 // pred_fallthru
      _
    // Predicated region
    $region58: #{tpu_custom_call.1} parent=1 // pred_check
      _
    $region59: #{tpu_custom_call.1} parent=1 // pred_check_branch
      %134 = sbr.rel (0) target = $region61
    $region60: #{tpu_custom_call.1} parent=1 // pred_region
      %135 = dma.done [#allocation3], 128
    $region61: #{tpu_custom_call.1} parent=1 // pred_fallthru
      _
    // Predicated region
    $region62: #{tpu_custom_call.1} parent=1 // pred_check
      _
    $region63: #{tpu_custom_call.1} parent=1 // pred_check_branch
      %137 = sbr.rel (0) target = $region65
    $region64: #{tpu_custom_call.1} parent=1 // pred_region
      %138 = dma.done [#allocation6], 256
    $region65: #{tpu_custom_call.1} parent=1 // pred_fallthru
      _
    // Predicated region
    $region66: #{tpu_custom_call.1} parent=1 // pred_check
      _
    $region67: #{tpu_custom_call.1} parent=1 // pred_check_branch
      %140 = sbr.rel (0) target = $region69
    $region68: #{tpu_custom_call.1} parent=1 // pred_region
      %141 = dma.done [#allocation6], 3072
    $region69: #{tpu_custom_call.1} parent=1 // pred_fallthru
      _
    // Predicated region
    $region70: #{tpu_custom_call.1} parent=1 // pred_check
      _
    $region71: #{tpu_custom_call.1} parent=1 // pred_check_branch
      %143 = sbr.rel (0) target = $region73
    $region72: #{tpu_custom_call.1} parent=1 // pred_region
      %144 = dma.done [#allocation9], 3072
    $region73: #{tpu_custom_call.1} parent=1 // pred_fallthru
      _
    // Predicated region
    $region74: #{tpu_custom_call.1} parent=1 // pred_check
      _
    $region75: #{tpu_custom_call.1} parent=1 // pred_check_branch
      %146 = sbr.rel (0) target = $region77
    $region76: #{tpu_custom_call.1} parent=1 // pred_region
      %147 = dma.done [#allocation9], 3072
    $region77: #{tpu_custom_call.1} parent=1 // pred_fallthru
      _
    // Predicated region
    $region78: #{tpu_custom_call.1} parent=1 // pred_check
      _
    $region79: #{tpu_custom_call.1} parent=1 // pred_check_branch
      %149 = sbr.rel (0) target = $region81
    $region80: #{tpu_custom_call.1} parent=1 // pred_region
      %150 = dma.done [#allocation12], 3072
    $region81: #{tpu_custom_call.1} parent=1 // pred_fallthru
      _
    // Predicated region
    $region82: #{tpu_custom_call.1} parent=1 // pred_check
      _
    $region83: #{tpu_custom_call.1} parent=1 // pred_check_branch
      %152 = sbr.rel (0) target = $region85
    $region84: #{tpu_custom_call.1} parent=1 // pred_region
      %153 = dma.done [#allocation12], 3072
    $region85: #{tpu_custom_call.1} parent=1 // pred_fallthru
      _
    // Predicated region
    $region86: #{tpu_custom_call.1} parent=1 // pred_check
      _
    $region87: #{tpu_custom_call.1} parent=1 // pred_check_branch
      %155 = sbr.rel (0) target = $region89
    $region88: #{tpu_custom_call.1} parent=1 // pred_region
      %156 = dma.done [#allocation15], 3072
    $region89: #{tpu_custom_call.1} parent=1 // pred_fallthru
      _
    %v158 = vld [vmem:[#allocation5] sm:$0xff]
    %v159 = vld [vmem:[#allocation5 + $0x8] sm:$0xff]
    %v160 = vld [vmem:[#allocation2] sm:$0xf]
    %v161 = vld [vmem:[#allocation2 + $0x4] sm:$0xf]
    %v162 = vld [vmem:[#allocation7] sm:$0xff]
    %v163 = vld [vmem:[#allocation7 + $0x8] sm:$0xf]
    %v164 = vld [vmem:[#allocation7 + $0xc] sm:$0xff]
    %v165 = vld [vmem:[#allocation7 + $0x14] sm:$0xf]
    %v166 = vld [vmem:[#allocation7 + $0x18] sm:$0xff]
    %v167 = vld [vmem:[#allocation7 + $0x20] sm:$0xf]
    %v168 = vld [vmem:[#allocation7 + $0x24] sm:$0xff]
    %v169 = vld [vmem:[#allocation7 + $0x2c] sm:$0xf]
    %v170 = vld [vmem:[#allocation7 + $0x30] sm:$0xff]
    %v171 = vld [vmem:[#allocation7 + $0x38] sm:$0xf]
    %v172 = vld [vmem:[#allocation7 + $0x3c] sm:$0xff]
    %v173 = vld [vmem:[#allocation7 + $0x44] sm:$0xf]
    %v174 = vld [vmem:[#allocation7 + $0x48] sm:$0xff]
    %v175 = vld [vmem:[#allocation7 + $0x50] sm:$0xf]
    %v176 = vld [vmem:[#allocation7 + $0x54] sm:$0xff]
    %v177 = vld [vmem:[#allocation7 + $0x5c] sm:$0xf]
    %v178 = vld [vmem:[#allocation7 + $0x60] sm:$0xff]
    %v179 = vld [vmem:[#allocation7 + $0x68] sm:$0xf]
    %v180 = vld [vmem:[#allocation7 + $0x6c] sm:$0xff]
    %v181 = vld [vmem:[#allocation7 + $0x74] sm:$0xf]
    %v182 = vld [vmem:[#allocation7 + $0x78] sm:$0xff]
    %v183 = vld [vmem:[#allocation7 + $0x80] sm:$0xf]
    %v184 = vld [vmem:[#allocation7 + $0x84] sm:$0xff]
    %v185 = vld [vmem:[#allocation7 + $0x8c] sm:$0xf]
    %v186 = vld [vmem:[#allocation7 + $0x90] sm:$0xff]
    %v187 = vld [vmem:[#allocation7 + $0x98] sm:$0xf]
    %v188 = vld [vmem:[#allocation7 + $0x9c] sm:$0xff]
    %v189 = vld [vmem:[#allocation7 + $0xa4] sm:$0xf]
    %v190 = vld [vmem:[#allocation7 + $0xa8] sm:$0xff]
    %v191 = vld [vmem:[#allocation7 + $0xb0] sm:$0xf]
    %v192 = vld [vmem:[#allocation7 + $0xb4] sm:$0xff]
    %v193 = vld [vmem:[#allocation7 + $0xbc] sm:$0xf]
    %v194 = vld [vmem:[%s3] sm:$0x7]
    %v196 = vlaneseq
    %v197 = vshrl.u32 %v196, 7
    %v198 = vsub.s32 0, %v197
    %v199 = vrot.slane %v194, %v198
    %v200 = vlaneseq
    %v201 = vshrl.u32 %v200, 7
    %v202 = vsub.s32 1, %v201
    %v203 = vrot.slane %v194, %v202
    %v204 = vlaneseq
    %v205 = vshrl.u32 %v204, 7
    %v206 = vsub.s32 2, %v205
    %v207 = vrot.slane %v194, %v206
    %v213 = vunpack.c.l.b16 %v160
    %v214 = vunpack.c.l.b16 %v161
    %v215 = vpack.c.b16 %v214, %v213
    %v249 = vunpack.c.l.b16 %v162
    %v250 = vunpack.c.h.b16 %v162
    %v251 = vunpack.c.l.b16 %v163
    %v252 = vunpack.c.l.b16 %v164
    %v253 = vunpack.c.h.b16 %v164
    %v254 = vunpack.c.l.b16 %v165
    %v255 = vunpack.c.l.b16 %v166
    %v256 = vunpack.c.h.b16 %v166
    %v257 = vunpack.c.l.b16 %v167
    %v258 = vunpack.c.l.b16 %v168
    %v259 = vunpack.c.h.b16 %v168
    %v260 = vunpack.c.l.b16 %v169
    %v261 = vunpack.c.l.b16 %v170
    %v262 = vunpack.c.h.b16 %v170
    %v263 = vunpack.c.l.b16 %v171
    %v264 = vunpack.c.l.b16 %v172
    %v265 = vunpack.c.h.b16 %v172
    %v266 = vunpack.c.l.b16 %v173
    %v267 = vunpack.c.l.b16 %v174
    %v268 = vunpack.c.h.b16 %v174
    %v269 = vunpack.c.l.b16 %v175
    %v270 = vunpack.c.l.b16 %v176
    %v271 = vunpack.c.h.b16 %v176
    %v272 = vunpack.c.l.b16 %v177
    %v273 = vunpack.c.l.b16 %v178
    %v274 = vunpack.c.h.b16 %v178
    %v275 = vunpack.c.l.b16 %v179
    %v276 = vunpack.c.l.b16 %v180
    %v277 = vunpack.c.h.b16 %v180
    %v278 = vunpack.c.l.b16 %v181
    %v279 = vunpack.c.l.b16 %v182
    %v280 = vunpack.c.h.b16 %v182
    %v281 = vunpack.c.l.b16 %v183
    %v282 = vunpack.c.l.b16 %v184
    %v283 = vunpack.c.h.b16 %v184
    %v284 = vunpack.c.l.b16 %v185
    %v285 = vunpack.c.l.b16 %v186
    %v286 = vunpack.c.h.b16 %v186
    %v287 = vunpack.c.l.b16 %v187
    %v288 = vunpack.c.l.b16 %v188
    %v289 = vunpack.c.h.b16 %v188
    %v290 = vunpack.c.l.b16 %v189
    %v291 = vunpack.c.l.b16 %v190
    %v292 = vunpack.c.h.b16 %v190
    %v293 = vunpack.c.l.b16 %v191
    %v294 = vunpack.c.l.b16 %v192
    %v295 = vunpack.c.h.b16 %v192
    %v296 = vunpack.c.l.b16 %v193
    %v297 = vpack.c.b16 %v252, %v249
    %v298 = vpack.c.b16 %v253, %v250
    %v299 = vpack.c.b16 %v254, %v251
    %v300 = vpack.c.b16 %v258, %v255
    %v301 = vpack.c.b16 %v259, %v256
    %v302 = vpack.c.b16 %v260, %v257
    %v303 = vpack.c.b16 %v264, %v261
    %v304 = vpack.c.b16 %v265, %v262
    %v305 = vpack.c.b16 %v266, %v263
    %v306 = vpack.c.b16 %v270, %v267
    %v307 = vpack.c.b16 %v271, %v268
    %v308 = vpack.c.b16 %v272, %v269
    %v309 = vpack.c.b16 %v276, %v273
    %v310 = vpack.c.b16 %v277, %v274
    %v311 = vpack.c.b16 %v278, %v275
    %v312 = vpack.c.b16 %v282, %v279
    %v313 = vpack.c.b16 %v283, %v280
    %v314 = vpack.c.b16 %v284, %v281
    %v315 = vpack.c.b16 %v288, %v285
    %v316 = vpack.c.b16 %v289, %v286
    %v317 = vpack.c.b16 %v290, %v287
    %v318 = vpack.c.b16 %v294, %v291
    %v319 = vpack.c.b16 %v295, %v292
    %v320 = vpack.c.b16 %v296, %v293
    %345 = vmatprep.subr.bf16.mxu0 %v319
    %346 = vmatpush1.bf16.msra.mxu0 %v318
    %347 = vmatprep.subr.bf16.mxu0 %v316
    %348 = vmatpush1.bf16.msra.mxu0 %v315
    %349 = vmatprep.subr.bf16.mxu0 %v313
    %350 = vmatpush1.bf16.msra.mxu0 %v312
    %351 = vmatprep.subr.bf16.mxu0 %v310
    %352 = vmatpush1.bf16.msra.mxu0 %v309
    %353 = vmatprep.subr.bf16.mxu0 %v307
    %354 = vmatpush1.bf16.msra.mxu0 %v306
    %355 = vmatprep.subr.bf16.mxu0 %v304
    %356 = vmatpush1.bf16.msra.mxu0 %v303
    %357 = vmatprep.subr.bf16.mxu0 %v301
    %358 = vmatpush1.bf16.msra.mxu0 %v300
    %359 = vmatprep.subr.bf16.mxu0 %v298
    %360 = vmatpush1.bf16.msra.mxu0 %v297
    %361 = vmatprep.subr.bf16.mxu0 0
    %362 = vmatpush2.bf16.msra.mxu0 0
    %363 = vmatprep.subr.bf16.mxu0 0
    %364 = vmatpush2.bf16.msra.mxu0 0
    %365 = vmatprep.subr.bf16.mxu0 0
    %366 = vmatpush2.bf16.msra.mxu0 0
    %367 = vmatprep.subr.bf16.mxu0 0
    %368 = vmatpush2.bf16.msra.mxu0 0
    %369 = vmatprep.subr.bf16.mxu0 0
    %370 = vmatpush2.bf16.msra.mxu0 0
    %371 = vmatprep.subr.bf16.mxu0 0
    %372 = vmatpush2.bf16.msra.mxu0 0
    %373 = vmatprep.subr.bf16.mxu0 0
    %374 = vmatpush2.bf16.msra.mxu0 0
    %375 = vmatprep.subr.bf16.mxu0 0
    %376 = vmatpush2.bf16.msra.mxu0 0
    %377 = vmatprep.mubr.bf16.mxu0 0
    %378 = vmatmul.mubr.bf16.gmra.mxu0 %v215
    %v379 = vpop.f32.mrf.mxu0
    %v380 = vadd.f32 %v199, %v379
    %v381 = vpop.f32.mrf.mxu0
    %v382 = vadd.f32 %v203, %v381
    %v383 = vpop.f32.mrf.mxu0
    %v384 = vadd.f32 %v199, %v383
    %v385 = vpop.f32.mrf.mxu0
    %v386 = vadd.f32 %v203, %v385
    %387 = vdwg.mxu0
    %388 = vmatprep.subr.bf16.mxu0 0
    %389 = vmatpush1.bf16.msra.mxu0 %v320
    %390 = vmatprep.subr.bf16.mxu0 0
    %391 = vmatpush1.bf16.msra.mxu0 %v317
    %392 = vmatprep.subr.bf16.mxu0 0
    %393 = vmatpush1.bf16.msra.mxu0 %v314
    %394 = vmatprep.subr.bf16.mxu0 0
    %395 = vmatpush1.bf16.msra.mxu0 %v311
    %396 = vmatprep.subr.bf16.mxu0 0
    %397 = vmatpush1.bf16.msra.mxu0 %v308
    %398 = vmatprep.subr.bf16.mxu0 0
    %399 = vmatpush1.bf16.msra.mxu0 %v305
    %400 = vmatprep.subr.bf16.mxu0 0
    %401 = vmatpush1.bf16.msra.mxu0 %v302
    %402 = vmatprep.subr.bf16.mxu0 0
    %403 = vmatpush1.bf16.msra.mxu0 %v299
    %404 = vmatprep.subr.bf16.mxu0 0
    %405 = vmatpush2.bf16.msra.mxu0 0
    %406 = vmatprep.subr.bf16.mxu0 0
    %407 = vmatpush2.bf16.msra.mxu0 0
    %408 = vmatprep.subr.bf16.mxu0 0
    %409 = vmatpush2.bf16.msra.mxu0 0
    %410 = vmatprep.subr.bf16.mxu0 0
    %411 = vmatpush2.bf16.msra.mxu0 0
    %412 = vmatprep.subr.bf16.mxu0 0
    %413 = vmatpush2.bf16.msra.mxu0 0
    %414 = vmatprep.subr.bf16.mxu0 0
    %415 = vmatpush2.bf16.msra.mxu0 0
    %416 = vmatprep.subr.bf16.mxu0 0
    %417 = vmatpush2.bf16.msra.mxu0 0
    %418 = vmatprep.subr.bf16.mxu0 0
    %419 = vmatpush2.bf16.msra.mxu0 0
    %420 = vmatprep.mubr.bf16.mxu0 0
    %421 = vmatmul.mubr.bf16.gmra.mxu0 %v215
    %v422 = vpop.f32.mrf.mxu0
    %v423 = vadd.f32 %v207, %v422
    %v424 = vpop.f32.mrf.mxu0
    %v425 = vpop.f32.mrf.mxu0
    %v426 = vadd.f32 %v207, %v425
    %v427 = vpop.f32.mrf.mxu0
    %428 = vdwg.mxu0
    %v429 = vmax.f32 %v380, 0.0
    %v430 = vmax.f32 %v382, 0.0
    %v431 = vmax.f32 %v423, 0.0
    %v432 = vmax.f32 %v384, 0.0
    %v433 = vmax.f32 %v386, 0.0
    %v434 = vmax.f32 %v426, 0.0
    %v435 = vpack.c.bf16 %v432, %v429
    %v436 = vpack.c.bf16 %v433, %v430
    %v437 = vpack.c.bf16 %v434, %v431
    %v438 = vpack.c.bf16 %v159, %v158
    %v439 = vld [vmem:[#allocation11] sm:$0xff]
    %v440 = vld [vmem:[#allocation11 + $0x8] sm:$0xf]
    %v441 = vld [vmem:[#allocation11 + $0xc] sm:$0xff]
    %v442 = vld [vmem:[#allocation11 + $0x14] sm:$0xf]
    %v443 = vld [vmem:[#allocation11 + $0x18] sm:$0xff]
    %v444 = vld [vmem:[#allocation11 + $0x20] sm:$0xf]
    %v445 = vld [vmem:[#allocation11 + $0x24] sm:$0xff]
    %v446 = vld [vmem:[#allocation11 + $0x2c] sm:$0xf]
    %v447 = vld [vmem:[#allocation11 + $0x30] sm:$0xff]
    %v448 = vld [vmem:[#allocation11 + $0x38] sm:$0xf]
    %v449 = vld [vmem:[#allocation11 + $0x3c] sm:$0xff]
    %v450 = vld [vmem:[#allocation11 + $0x44] sm:$0xf]
    %v451 = vld [vmem:[#allocation11 + $0x48] sm:$0xff]
    %v452 = vld [vmem:[#allocation11 + $0x50] sm:$0xf]
    %v453 = vld [vmem:[#allocation11 + $0x54] sm:$0xff]
    %v454 = vld [vmem:[#allocation11 + $0x5c] sm:$0xf]
    %v455 = vld [vmem:[#allocation11 + $0x60] sm:$0xff]
    %v456 = vld [vmem:[#allocation11 + $0x68] sm:$0xf]
    %v457 = vld [vmem:[#allocation11 + $0x6c] sm:$0xff]
    %v458 = vld [vmem:[#allocation11 + $0x74] sm:$0xf]
    %v459 = vld [vmem:[#allocation11 + $0x78] sm:$0xff]
    %v460 = vld [vmem:[#allocation11 + $0x80] sm:$0xf]
    %v461 = vld [vmem:[#allocation11 + $0x84] sm:$0xff]
    %v462 = vld [vmem:[#allocation11 + $0x8c] sm:$0xf]
    %v463 = vld [vmem:[#allocation11 + $0x90] sm:$0xff]
    %v464 = vld [vmem:[#allocation11 + $0x98] sm:$0xf]
    %v465 = vld [vmem:[#allocation11 + $0x9c] sm:$0xff]
    %v466 = vld [vmem:[#allocation11 + $0xa4] sm:$0xf]
    %v467 = vld [vmem:[#allocation11 + $0xa8] sm:$0xff]
    %v468 = vld [vmem:[#allocation11 + $0xb0] sm:$0xf]
    %v469 = vld [vmem:[#allocation11 + $0xb4] sm:$0xff]
    %v470 = vld [vmem:[#allocation11 + $0xbc] sm:$0xf]
    %v471 = vld [vmem:[%s9] sm:$0x7]
    %v473 = vlaneseq
    %v474 = vshrl.u32 %v473, 7
    %v475 = vsub.s32 0, %v474
    %v476 = vrot.slane %v471, %v475
    %v477 = vlaneseq
    %v478 = vshrl.u32 %v477, 7
    %v479 = vsub.s32 1, %v478
    %v480 = vrot.slane %v471, %v479
    %v481 = vlaneseq
    %v482 = vshrl.u32 %v481, 7
    %v483 = vsub.s32 2, %v482
    %v484 = vrot.slane %v471, %v483
    %v520 = vunpack.c.l.b16 %v439
    %v521 = vunpack.c.h.b16 %v439
    %v522 = vunpack.c.l.b16 %v440
    %v523 = vunpack.c.l.b16 %v441
    %v524 = vunpack.c.h.b16 %v441
    %v525 = vunpack.c.l.b16 %v442
    %v526 = vunpack.c.l.b16 %v443
    %v527 = vunpack.c.h.b16 %v443
    %v528 = vunpack.c.l.b16 %v444
    %v529 = vunpack.c.l.b16 %v445
    %v530 = vunpack.c.h.b16 %v445
    %v531 = vunpack.c.l.b16 %v446
    %v532 = vunpack.c.l.b16 %v447
    %v533 = vunpack.c.h.b16 %v447
    %v534 = vunpack.c.l.b16 %v448
    %v535 = vunpack.c.l.b16 %v449
    %v536 = vunpack.c.h.b16 %v449
    %v537 = vunpack.c.l.b16 %v450
    %v538 = vunpack.c.l.b16 %v451
    %v539 = vunpack.c.h.b16 %v451
    %v540 = vunpack.c.l.b16 %v452
    %v541 = vunpack.c.l.b16 %v453
    %v542 = vunpack.c.h.b16 %v453
    %v543 = vunpack.c.l.b16 %v454
    %v544 = vunpack.c.l.b16 %v455
    %v545 = vunpack.c.h.b16 %v455
    %v546 = vunpack.c.l.b16 %v456
    %v547 = vunpack.c.l.b16 %v457
    %v548 = vunpack.c.h.b16 %v457
    %v549 = vunpack.c.l.b16 %v458
    %v550 = vunpack.c.l.b16 %v459
    %v551 = vunpack.c.h.b16 %v459
    %v552 = vunpack.c.l.b16 %v460
    %v553 = vunpack.c.l.b16 %v461
    %v554 = vunpack.c.h.b16 %v461
    %v555 = vunpack.c.l.b16 %v462
    %v556 = vunpack.c.l.b16 %v463
    %v557 = vunpack.c.h.b16 %v463
    %v558 = vunpack.c.l.b16 %v464
    %v559 = vunpack.c.l.b16 %v465
    %v560 = vunpack.c.h.b16 %v465
    %v561 = vunpack.c.l.b16 %v466
    %v562 = vunpack.c.l.b16 %v467
    %v563 = vunpack.c.h.b16 %v467
    %v564 = vunpack.c.l.b16 %v468
    %v565 = vunpack.c.l.b16 %v469
    %v566 = vunpack.c.h.b16 %v469
    %v567 = vunpack.c.l.b16 %v470
    %v568 = vpack.c.b16 %v523, %v520
    %v569 = vpack.c.b16 %v524, %v521
    %v570 = vpack.c.b16 %v525, %v522
    %v571 = vpack.c.b16 %v529, %v526
    %v572 = vpack.c.b16 %v530, %v527
    %v573 = vpack.c.b16 %v531, %v528
    %v574 = vpack.c.b16 %v535, %v532
    %v575 = vpack.c.b16 %v536, %v533
    %v576 = vpack.c.b16 %v537, %v534
    %v577 = vpack.c.b16 %v541, %v538
    %v578 = vpack.c.b16 %v542, %v539
    %v579 = vpack.c.b16 %v543, %v540
    %v580 = vpack.c.b16 %v547, %v544
    %v581 = vpack.c.b16 %v548, %v545
    %v582 = vpack.c.b16 %v549, %v546
    %v583 = vpack.c.b16 %v553, %v550
    %v584 = vpack.c.b16 %v554, %v551
    %v585 = vpack.c.b16 %v555, %v552
    %v586 = vpack.c.b16 %v559, %v556
    %v587 = vpack.c.b16 %v560, %v557
    %v588 = vpack.c.b16 %v561, %v558
    %v589 = vpack.c.b16 %v565, %v562
    %v590 = vpack.c.b16 %v566, %v563
    %v591 = vpack.c.b16 %v567, %v564
    %616 = vmatprep.subr.bf16.mxu0 %v590
    %617 = vmatpush1.bf16.msra.mxu0 %v589
    %618 = vmatprep.subr.bf16.mxu0 %v587
    %619 = vmatpush1.bf16.msra.mxu0 %v586
    %620 = vmatprep.subr.bf16.mxu0 %v584
    %621 = vmatpush1.bf16.msra.mxu0 %v583
    %622 = vmatprep.subr.bf16.mxu0 %v581
    %623 = vmatpush1.bf16.msra.mxu0 %v580
    %624 = vmatprep.subr.bf16.mxu0 %v578
    %625 = vmatpush1.bf16.msra.mxu0 %v577
    %626 = vmatprep.subr.bf16.mxu0 %v575
    %627 = vmatpush1.bf16.msra.mxu0 %v574
    %628 = vmatprep.subr.bf16.mxu0 %v572
    %629 = vmatpush1.bf16.msra.mxu0 %v571
    %630 = vmatprep.subr.bf16.mxu0 %v569
    %631 = vmatpush1.bf16.msra.mxu0 %v568
    %632 = vmatprep.subr.bf16.mxu0 0
    %633 = vmatpush2.bf16.msra.mxu0 0
    %634 = vmatprep.subr.bf16.mxu0 0
    %635 = vmatpush2.bf16.msra.mxu0 0
    %636 = vmatprep.subr.bf16.mxu0 0
    %637 = vmatpush2.bf16.msra.mxu0 0
    %638 = vmatprep.subr.bf16.mxu0 0
    %639 = vmatpush2.bf16.msra.mxu0 0
    %640 = vmatprep.subr.bf16.mxu0 0
    %641 = vmatpush2.bf16.msra.mxu0 0
    %642 = vmatprep.subr.bf16.mxu0 0
    %643 = vmatpush2.bf16.msra.mxu0 0
    %644 = vmatprep.subr.bf16.mxu0 0
    %645 = vmatpush2.bf16.msra.mxu0 0
    %646 = vmatprep.subr.bf16.mxu0 0
    %647 = vmatpush2.bf16.msra.mxu0 0
    %648 = vmatprep.mubr.bf16.mxu0 0
    %649 = vmatmul.mubr.bf16.gmra.mxu0 %v438
    %v650 = vpop.f32.mrf.mxu0
    %v651 = vadd.f32 %v476, %v650
    %v652 = vpop.f32.mrf.mxu0
    %v653 = vadd.f32 %v480, %v652
    %v654 = vpop.f32.mrf.mxu0
    %v655 = vadd.f32 %v476, %v654
    %v656 = vpop.f32.mrf.mxu0
    %v657 = vadd.f32 %v480, %v656
    %658 = vdwg.mxu0
    %659 = vmatprep.subr.bf16.mxu0 0
    %660 = vmatpush1.bf16.msra.mxu0 %v591
    %661 = vmatprep.subr.bf16.mxu0 0
    %662 = vmatpush1.bf16.msra.mxu0 %v588
    %663 = vmatprep.subr.bf16.mxu0 0
    %664 = vmatpush1.bf16.msra.mxu0 %v585
    %665 = vmatprep.subr.bf16.mxu0 0
    %666 = vmatpush1.bf16.msra.mxu0 %v582
    %667 = vmatprep.subr.bf16.mxu0 0
    %668 = vmatpush1.bf16.msra.mxu0 %v579
    %669 = vmatprep.subr.bf16.mxu0 0
    %670 = vmatpush1.bf16.msra.mxu0 %v576
    %671 = vmatprep.subr.bf16.mxu0 0
    %672 = vmatpush1.bf16.msra.mxu0 %v573
    %673 = vmatprep.subr.bf16.mxu0 0
    %674 = vmatpush1.bf16.msra.mxu0 %v570
    %675 = vmatprep.subr.bf16.mxu0 0
    %676 = vmatpush2.bf16.msra.mxu0 0
    %677 = vmatprep.subr.bf16.mxu0 0
    %678 = vmatpush2.bf16.msra.mxu0 0
    %679 = vmatprep.subr.bf16.mxu0 0
    %680 = vmatpush2.bf16.msra.mxu0 0
    %681 = vmatprep.subr.bf16.mxu0 0
    %682 = vmatpush2.bf16.msra.mxu0 0
    %683 = vmatprep.subr.bf16.mxu0 0
    %684 = vmatpush2.bf16.msra.mxu0 0
    %685 = vmatprep.subr.bf16.mxu0 0
    %686 = vmatpush2.bf16.msra.mxu0 0
    %687 = vmatprep.subr.bf16.mxu0 0
    %688 = vmatpush2.bf16.msra.mxu0 0
    %689 = vmatprep.subr.bf16.mxu0 0
    %690 = vmatpush2.bf16.msra.mxu0 0
    %691 = vmatprep.mubr.bf16.mxu0 0
    %692 = vmatmul.mubr.bf16.gmra.mxu0 %v438
    %v693 = vpop.f32.mrf.mxu0
    %v694 = vadd.f32 %v484, %v693
    %v695 = vpop.f32.mrf.mxu0
    %v696 = vpop.f32.mrf.mxu0
    %v697 = vadd.f32 %v484, %v696
    %v698 = vpop.f32.mrf.mxu0
    %699 = vdwg.mxu0
    %v700 = vmax.f32 %v651, 0.0
    %v701 = vmax.f32 %v653, 0.0
    %v702 = vmax.f32 %v694, 0.0
    %v703 = vmax.f32 %v655, 0.0
    %v704 = vmax.f32 %v657, 0.0
    %v705 = vmax.f32 %v697, 0.0
    %v706 = vpack.c.bf16 %v703, %v700
    %v707 = vpack.c.bf16 %v704, %v701
    %v708 = vpack.c.bf16 %v705, %v702
    %v709 = vld [vmem:[#allocation8] sm:$0xf]
    %v710 = vld [vmem:[#allocation8 + $0x4] sm:$0xf]
    %v711 = vld [vmem:[#allocation8 + $0x8] sm:$0xf]
    %v712 = vld [vmem:[#allocation8 + $0xc] sm:$0xf]
    %v713 = vld [vmem:[#allocation8 + $0x10] sm:$0xf]
    %v714 = vld [vmem:[#allocation8 + $0x14] sm:$0xf]
    %v715 = vld [vmem:[#allocation8 + $0x18] sm:$0xf]
    %v716 = vld [vmem:[#allocation8 + $0x1c] sm:$0xf]
    %v717 = vld [vmem:[#allocation8 + $0x20] sm:$0xf]
    %v718 = vld [vmem:[#allocation8 + $0x24] sm:$0xf]
    %v719 = vld [vmem:[#allocation8 + $0x28] sm:$0xf]
    %v720 = vld [vmem:[#allocation8 + $0x2c] sm:$0xf]
    %v721 = vld [vmem:[#allocation8 + $0x30] sm:$0xf]
    %v722 = vld [vmem:[#allocation8 + $0x34] sm:$0xf]
    %v723 = vld [vmem:[#allocation8 + $0x38] sm:$0xf]
    %v724 = vld [vmem:[#allocation8 + $0x3c] sm:$0xf]
    %v725 = vld [vmem:[%s5] sm:$0x1]
    %v727 = vlaneseq
    %v728 = vshrl.u32 %v727, 7
    %v729 = vsub.s32 0, %v728
    %v730 = vrot.slane %v725, %v729
    %v748 = vunpack.c.l.b16 %v709
    %v749 = vunpack.c.l.b16 %v710
    %v750 = vunpack.c.l.b16 %v711
    %v751 = vunpack.c.l.b16 %v712
    %v752 = vunpack.c.l.b16 %v713
    %v753 = vunpack.c.l.b16 %v714
    %v754 = vunpack.c.l.b16 %v715
    %v755 = vunpack.c.l.b16 %v716
    %v756 = vunpack.c.l.b16 %v717
    %v757 = vunpack.c.l.b16 %v718
    %v758 = vunpack.c.l.b16 %v719
    %v759 = vunpack.c.l.b16 %v720
    %v760 = vunpack.c.l.b16 %v721
    %v761 = vunpack.c.l.b16 %v722
    %v762 = vunpack.c.l.b16 %v723
    %v763 = vunpack.c.l.b16 %v724
    %v764 = vpack.c.b16 %v749, %v748
    %v765 = vpack.c.b16 %v751, %v750
    %v766 = vpack.c.b16 %v753, %v752
    %v767 = vpack.c.b16 %v755, %v754
    %v768 = vpack.c.b16 %v757, %v756
    %v769 = vpack.c.b16 %v759, %v758
    %v770 = vpack.c.b16 %v761, %v760
    %v771 = vpack.c.b16 %v763, %v762
    %780 = vmatprep.subr.bf16.mxu0 0
    %781 = vmatpush1.bf16.msra.mxu0 %v771
    %782 = vmatprep.subr.bf16.mxu0 0
    %783 = vmatpush1.bf16.msra.mxu0 %v770
    %784 = vmatprep.subr.bf16.mxu0 0
    %785 = vmatpush1.bf16.msra.mxu0 %v769
    %786 = vmatprep.subr.bf16.mxu0 0
    %787 = vmatpush1.bf16.msra.mxu0 %v768
    %788 = vmatprep.subr.bf16.mxu0 0
    %789 = vmatpush1.bf16.msra.mxu0 %v767
    %790 = vmatprep.subr.bf16.mxu0 0
    %791 = vmatpush1.bf16.msra.mxu0 %v766
    %792 = vmatprep.subr.bf16.mxu0 0
    %793 = vmatpush1.bf16.msra.mxu0 %v765
    %794 = vmatprep.subr.bf16.mxu0 0
    %795 = vmatpush1.bf16.msra.mxu0 %v764
    %796 = vmatprep.subr.bf16.mxu0 0
    %797 = vmatpush2.bf16.msra.mxu0 0
    %798 = vmatprep.subr.bf16.mxu0 0
    %799 = vmatpush2.bf16.msra.mxu0 0
    %800 = vmatprep.subr.bf16.mxu0 0
    %801 = vmatpush2.bf16.msra.mxu0 0
    %802 = vmatprep.subr.bf16.mxu0 0
    %803 = vmatpush2.bf16.msra.mxu0 0
    %804 = vmatprep.subr.bf16.mxu0 0
    %805 = vmatpush2.bf16.msra.mxu0 0
    %806 = vmatprep.subr.bf16.mxu0 0
    %807 = vmatpush2.bf16.msra.mxu0 0
    %808 = vmatprep.subr.bf16.mxu0 0
    %809 = vmatpush2.bf16.msra.mxu0 0
    %810 = vmatprep.subr.bf16.mxu0 0
    %811 = vmatpush2.bf16.msra.mxu0 0
    %812 = vmatprep.mubr.bf16.mxu0 0
    %813 = vmatmul.mubr.bf16.gmra.mxu0 %v435
    %v814 = vpop.f32.mrf.mxu0
    %v815 = vadd.f32 %v730, %v814
    %v816 = vpop.f32.mrf.mxu0
    %v817 = vpop.f32.mrf.mxu0
    %v818 = vadd.f32 %v730, %v817
    %v819 = vpop.f32.mrf.mxu0
    %820 = vdwg.mxu0
    %v821 = vmax.f32 %v815, 0.0
    %v822 = vmax.f32 %v818, 0.0
    %v823 = vpack.c.bf16 %v822, %v821
    %v824 = vld [vmem:[#allocation10] sm:$0xf]
    %v825 = vld [vmem:[#allocation10 + $0x4] sm:$0xf]
    %v826 = vld [vmem:[#allocation10 + $0x8] sm:$0xf]
    %v827 = vld [vmem:[#allocation10 + $0xc] sm:$0xf]
    %v828 = vld [vmem:[#allocation10 + $0x10] sm:$0xf]
    %v829 = vld [vmem:[#allocation10 + $0x14] sm:$0xf]
    %v830 = vld [vmem:[#allocation10 + $0x18] sm:$0xf]
    %v831 = vld [vmem:[#allocation10 + $0x1c] sm:$0xf]
    %v832 = vld [vmem:[#allocation10 + $0x20] sm:$0xf]
    %v833 = vld [vmem:[#allocation10 + $0x24] sm:$0xf]
    %v834 = vld [vmem:[#allocation10 + $0x28] sm:$0xf]
    %v835 = vld [vmem:[#allocation10 + $0x2c] sm:$0xf]
    %v836 = vld [vmem:[#allocation10 + $0x30] sm:$0xf]
    %v837 = vld [vmem:[#allocation10 + $0x34] sm:$0xf]
    %v838 = vld [vmem:[#allocation10 + $0x38] sm:$0xf]
    %v839 = vld [vmem:[#allocation10 + $0x3c] sm:$0xf]
    %v840 = vld [vmem:[%s7] sm:$0x1]
    %v842 = vlaneseq
    %v843 = vshrl.u32 %v842, 7
    %v844 = vsub.s32 0, %v843
    %v845 = vrot.slane %v840, %v844
    %v863 = vunpack.c.l.b16 %v824
    %v864 = vunpack.c.l.b16 %v825
    %v865 = vunpack.c.l.b16 %v826
    %v866 = vunpack.c.l.b16 %v827
    %v867 = vunpack.c.l.b16 %v828
    %v868 = vunpack.c.l.b16 %v829
    %v869 = vunpack.c.l.b16 %v830
    %v870 = vunpack.c.l.b16 %v831
    %v871 = vunpack.c.l.b16 %v832
    %v872 = vunpack.c.l.b16 %v833
    %v873 = vunpack.c.l.b16 %v834
    %v874 = vunpack.c.l.b16 %v835
    %v875 = vunpack.c.l.b16 %v836
    %v876 = vunpack.c.l.b16 %v837
    %v877 = vunpack.c.l.b16 %v838
    %v878 = vunpack.c.l.b16 %v839
    %v879 = vpack.c.b16 %v864, %v863
    %v880 = vpack.c.b16 %v866, %v865
    %v881 = vpack.c.b16 %v868, %v867
    %v882 = vpack.c.b16 %v870, %v869
    %v883 = vpack.c.b16 %v872, %v871
    %v884 = vpack.c.b16 %v874, %v873
    %v885 = vpack.c.b16 %v876, %v875
    %v886 = vpack.c.b16 %v878, %v877
    %895 = vmatprep.subr.bf16.mxu0 0
    %896 = vmatpush1.bf16.msra.mxu0 %v886
    %897 = vmatprep.subr.bf16.mxu0 0
    %898 = vmatpush1.bf16.msra.mxu0 %v885
    %899 = vmatprep.subr.bf16.mxu0 0
    %900 = vmatpush1.bf16.msra.mxu0 %v884
    %901 = vmatprep.subr.bf16.mxu0 0
    %902 = vmatpush1.bf16.msra.mxu0 %v883
    %903 = vmatprep.subr.bf16.mxu0 0
    %904 = vmatpush1.bf16.msra.mxu0 %v882
    %905 = vmatprep.subr.bf16.mxu0 0
    %906 = vmatpush1.bf16.msra.mxu0 %v881
    %907 = vmatprep.subr.bf16.mxu0 0
    %908 = vmatpush1.bf16.msra.mxu0 %v880
    %909 = vmatprep.subr.bf16.mxu0 0
    %910 = vmatpush1.bf16.msra.mxu0 %v879
    %911 = vmatprep.subr.bf16.mxu0 0
    %912 = vmatpush2.bf16.msra.mxu0 0
    %913 = vmatprep.subr.bf16.mxu0 0
    %914 = vmatpush2.bf16.msra.mxu0 0
    %915 = vmatprep.subr.bf16.mxu0 0
    %916 = vmatpush2.bf16.msra.mxu0 0
    %917 = vmatprep.subr.bf16.mxu0 0
    %918 = vmatpush2.bf16.msra.mxu0 0
    %919 = vmatprep.subr.bf16.mxu0 0
    %920 = vmatpush2.bf16.msra.mxu0 0
    %921 = vmatprep.subr.bf16.mxu0 0
    %922 = vmatpush2.bf16.msra.mxu0 0
    %923 = vmatprep.subr.bf16.mxu0 0
    %924 = vmatpush2.bf16.msra.mxu0 0
    %925 = vmatprep.subr.bf16.mxu0 0
    %926 = vmatpush2.bf16.msra.mxu0 0
    %927 = vmatprep.mubr.bf16.mxu0 0
    %928 = vmatmul.mubr.bf16.gmra.mxu0 %v823
    %v929 = vpop.f32.mrf.mxu0
    %v930 = vadd.f32 %v845, %v929
    %v931 = vpop.f32.mrf.mxu0
    %v932 = vpop.f32.mrf.mxu0
    %v933 = vadd.f32 %v845, %v932
    %v934 = vpop.f32.mrf.mxu0
    %935 = vdwg.mxu0
    %v936 = vld [vmem:[#allocation13] sm:$0xf]
    %v937 = vld [vmem:[#allocation13 + $0x4] sm:$0xf]
    %v938 = vld [vmem:[#allocation13 + $0x8] sm:$0xf]
    %v939 = vld [vmem:[#allocation13 + $0xc] sm:$0xf]
    %v940 = vld [vmem:[#allocation13 + $0x10] sm:$0xf]
    %v941 = vld [vmem:[#allocation13 + $0x14] sm:$0xf]
    %v942 = vld [vmem:[#allocation13 + $0x18] sm:$0xf]
    %v943 = vld [vmem:[#allocation13 + $0x1c] sm:$0xf]
    %v944 = vld [vmem:[#allocation13 + $0x20] sm:$0xf]
    %v945 = vld [vmem:[#allocation13 + $0x24] sm:$0xf]
    %v946 = vld [vmem:[#allocation13 + $0x28] sm:$0xf]
    %v947 = vld [vmem:[#allocation13 + $0x2c] sm:$0xf]
    %v948 = vld [vmem:[#allocation13 + $0x30] sm:$0xf]
    %v949 = vld [vmem:[#allocation13 + $0x34] sm:$0xf]
    %v950 = vld [vmem:[#allocation13 + $0x38] sm:$0xf]
    %v951 = vld [vmem:[#allocation13 + $0x3c] sm:$0xf]
    %v952 = vld [vmem:[%s11] sm:$0x1]
    %v954 = vlaneseq
    %v955 = vshrl.u32 %v954, 7
    %v956 = vsub.s32 0, %v955
    %v957 = vrot.slane %v952, %v956
    %v975 = vunpack.c.l.b16 %v936
    %v976 = vunpack.c.l.b16 %v937
    %v977 = vunpack.c.l.b16 %v938
    %v978 = vunpack.c.l.b16 %v939
    %v979 = vunpack.c.l.b16 %v940
    %v980 = vunpack.c.l.b16 %v941
    %v981 = vunpack.c.l.b16 %v942
    %v982 = vunpack.c.l.b16 %v943
    %v983 = vunpack.c.l.b16 %v944
    %v984 = vunpack.c.l.b16 %v945
    %v985 = vunpack.c.l.b16 %v946
    %v986 = vunpack.c.l.b16 %v947
    %v987 = vunpack.c.l.b16 %v948
    %v988 = vunpack.c.l.b16 %v949
    %v989 = vunpack.c.l.b16 %v950
    %v990 = vunpack.c.l.b16 %v951
    %v991 = vpack.c.b16 %v976, %v975
    %v992 = vpack.c.b16 %v978, %v977
    %v993 = vpack.c.b16 %v980, %v979
    %v994 = vpack.c.b16 %v982, %v981
    %v995 = vpack.c.b16 %v984, %v983
    %v996 = vpack.c.b16 %v986, %v985
    %v997 = vpack.c.b16 %v988, %v987
    %v998 = vpack.c.b16 %v990, %v989
    %1007 = vmatprep.subr.bf16.mxu0 0
    %1008 = vmatpush1.bf16.msra.mxu0 %v998
    %1009 = vmatprep.subr.bf16.mxu0 0
    %1010 = vmatpush1.bf16.msra.mxu0 %v997
    %1011 = vmatprep.subr.bf16.mxu0 0
    %1012 = vmatpush1.bf16.msra.mxu0 %v996
    %1013 = vmatprep.subr.bf16.mxu0 0
    %1014 = vmatpush1.bf16.msra.mxu0 %v995
    %1015 = vmatprep.subr.bf16.mxu0 0
    %1016 = vmatpush1.bf16.msra.mxu0 %v994
    %1017 = vmatprep.subr.bf16.mxu0 0
    %1018 = vmatpush1.bf16.msra.mxu0 %v993
    %1019 = vmatprep.subr.bf16.mxu0 0
    %1020 = vmatpush1.bf16.msra.mxu0 %v992
    %1021 = vmatprep.subr.bf16.mxu0 0
    %1022 = vmatpush1.bf16.msra.mxu0 %v991
    %1023 = vmatprep.subr.bf16.mxu0 0
    %1024 = vmatpush2.bf16.msra.mxu0 0
    %1025 = vmatprep.subr.bf16.mxu0 0
    %1026 = vmatpush2.bf16.msra.mxu0 0
    %1027 = vmatprep.subr.bf16.mxu0 0
    %1028 = vmatpush2.bf16.msra.mxu0 0
    %1029 = vmatprep.subr.bf16.mxu0 0
    %1030 = vmatpush2.bf16.msra.mxu0 0
    %1031 = vmatprep.subr.bf16.mxu0 0
    %1032 = vmatpush2.bf16.msra.mxu0 0
    %1033 = vmatprep.subr.bf16.mxu0 0
    %1034 = vmatpush2.bf16.msra.mxu0 0
    %1035 = vmatprep.subr.bf16.mxu0 0
    %1036 = vmatpush2.bf16.msra.mxu0 0
    %1037 = vmatprep.subr.bf16.mxu0 0
    %1038 = vmatpush2.bf16.msra.mxu0 0
    %1039 = vmatprep.mubr.bf16.mxu0 0
    %1040 = vmatmul.mubr.bf16.gmra.mxu0 %v706
    %v1041 = vpop.f32.mrf.mxu0
    %v1042 = vadd.f32 %v957, %v1041
    %v1043 = vpop.f32.mrf.mxu0
    %v1044 = vpop.f32.mrf.mxu0
    %v1045 = vadd.f32 %v957, %v1044
    %v1046 = vpop.f32.mrf.mxu0
    %1047 = vdwg.mxu0
    %v1048 = vmax.f32 %v1042, 0.0
    %v1049 = vmax.f32 %v1045, 0.0
    %v1050 = vpack.c.bf16 %v1049, %v1048
    %v1051 = vld [vmem:[#allocation14] sm:$0xf]
    %v1052 = vld [vmem:[#allocation14 + $0x4] sm:$0xf]
    %v1053 = vld [vmem:[#allocation14 + $0x8] sm:$0xf]
    %v1054 = vld [vmem:[#allocation14 + $0xc] sm:$0xf]
    %v1055 = vld [vmem:[#allocation14 + $0x10] sm:$0xf]
    %v1056 = vld [vmem:[#allocation14 + $0x14] sm:$0xf]
    %v1057 = vld [vmem:[#allocation14 + $0x18] sm:$0xf]
    %v1058 = vld [vmem:[#allocation14 + $0x1c] sm:$0xf]
    %v1059 = vld [vmem:[#allocation14 + $0x20] sm:$0xf]
    %v1060 = vld [vmem:[#allocation14 + $0x24] sm:$0xf]
    %v1061 = vld [vmem:[#allocation14 + $0x28] sm:$0xf]
    %v1062 = vld [vmem:[#allocation14 + $0x2c] sm:$0xf]
    %v1063 = vld [vmem:[#allocation14 + $0x30] sm:$0xf]
    %v1064 = vld [vmem:[#allocation14 + $0x34] sm:$0xf]
    %v1065 = vld [vmem:[#allocation14 + $0x38] sm:$0xf]
    %v1066 = vld [vmem:[#allocation14 + $0x3c] sm:$0xf]
    %v1067 = vld [vmem:[%s13] sm:$0x1]
    %v1069 = vlaneseq
    %v1070 = vshrl.u32 %v1069, 7
    %v1071 = vsub.s32 0, %v1070
    %v1072 = vrot.slane %v1067, %v1071
    %v1090 = vunpack.c.l.b16 %v1051
    %v1091 = vunpack.c.l.b16 %v1052
    %v1092 = vunpack.c.l.b16 %v1053
    %v1093 = vunpack.c.l.b16 %v1054
    %v1094 = vunpack.c.l.b16 %v1055
    %v1095 = vunpack.c.l.b16 %v1056
    %v1096 = vunpack.c.l.b16 %v1057
    %v1097 = vunpack.c.l.b16 %v1058
    %v1098 = vunpack.c.l.b16 %v1059
    %v1099 = vunpack.c.l.b16 %v1060
    %v1100 = vunpack.c.l.b16 %v1061
    %v1101 = vunpack.c.l.b16 %v1062
    %v1102 = vunpack.c.l.b16 %v1063
    %v1103 = vunpack.c.l.b16 %v1064
    %v1104 = vunpack.c.l.b16 %v1065
    %v1105 = vunpack.c.l.b16 %v1066
    %v1106 = vpack.c.b16 %v1091, %v1090
    %v1107 = vpack.c.b16 %v1093, %v1092
    %v1108 = vpack.c.b16 %v1095, %v1094
    %v1109 = vpack.c.b16 %v1097, %v1096
    %v1110 = vpack.c.b16 %v1099, %v1098
    %v1111 = vpack.c.b16 %v1101, %v1100
    %v1112 = vpack.c.b16 %v1103, %v1102
    %v1113 = vpack.c.b16 %v1105, %v1104
    %1122 = vmatprep.subr.bf16.mxu0 0
    %1123 = vmatpush1.bf16.msra.mxu0 %v1113
    %1124 = vmatprep.subr.bf16.mxu0 0
    %1125 = vmatpush1.bf16.msra.mxu0 %v1112
    %1126 = vmatprep.subr.bf16.mxu0 0
    %1127 = vmatpush1.bf16.msra.mxu0 %v1111
    %1128 = vmatprep.subr.bf16.mxu0 0
    %1129 = vmatpush1.bf16.msra.mxu0 %v1110
    %1130 = vmatprep.subr.bf16.mxu0 0
    %1131 = vmatpush1.bf16.msra.mxu0 %v1109
    %1132 = vmatprep.subr.bf16.mxu0 0
    %1133 = vmatpush1.bf16.msra.mxu0 %v1108
    %1134 = vmatprep.subr.bf16.mxu0 0
    %1135 = vmatpush1.bf16.msra.mxu0 %v1107
    %1136 = vmatprep.subr.bf16.mxu0 0
    %1137 = vmatpush1.bf16.msra.mxu0 %v1106
    %1138 = vmatprep.subr.bf16.mxu0 0
    %1139 = vmatpush2.bf16.msra.mxu0 0
    %1140 = vmatprep.subr.bf16.mxu0 0
    %1141 = vmatpush2.bf16.msra.mxu0 0
    %1142 = vmatprep.subr.bf16.mxu0 0
    %1143 = vmatpush2.bf16.msra.mxu0 0
    %1144 = vmatprep.subr.bf16.mxu0 0
    %1145 = vmatpush2.bf16.msra.mxu0 0
    %1146 = vmatprep.subr.bf16.mxu0 0
    %1147 = vmatpush2.bf16.msra.mxu0 0
    %1148 = vmatprep.subr.bf16.mxu0 0
    %1149 = vmatpush2.bf16.msra.mxu0 0
    %1150 = vmatprep.subr.bf16.mxu0 0
    %1151 = vmatpush2.bf16.msra.mxu0 0
    %1152 = vmatprep.subr.bf16.mxu0 0
    %1153 = vmatpush2.bf16.msra.mxu0 0
    %1154 = vmatprep.mubr.bf16.mxu0 0
    %1155 = vmatmul.mubr.bf16.gmra.mxu0 %v1050
    %v1156 = vpop.f32.mrf.mxu0
    %v1157 = vadd.f32 %v1072, %v1156
    %v1158 = vpop.f32.mrf.mxu0
    %v1159 = vpop.f32.mrf.mxu0
    %v1160 = vadd.f32 %v1072, %v1159
    %v1161 = vpop.f32.mrf.mxu0
    %1162 = vdwg.mxu0
    %v1163 = vadd.f32 %v930, %v1157
    %v1164 = vadd.f32 %v933, %v1160
    %v1165 = vxor.u32 %v1163, 2147483648
    %v1166 = vxor.u32 %v1164, 2147483648
    %v1167 = vmul.f32 %v1165, 1.442695
    %v1168 = vpow.pop %v1167
    %v1169 = vmul.f32 %v1166, 1.442695
    %v1170 = vpow.pop %v1169
    %v1171 = vadd.f32 %v1168, 1.0
    %v1172 = vadd.f32 %v1170, 1.0
    %v1173 = vrcp.pop %v1171
    %v1174 = vmul.f32 1.0, %v1173
    %v1175 = vrcp.pop %v1172
    %v1176 = vmul.f32 1.0, %v1175
    %s1177 = scalar_lea.vmem [#allocation8], 64
    %v1178 = vld [vmem:[%s1177] sm:$0xf]
    %v1179 = vld [vmem:[%s1177 + $0x4] sm:$0xf]
    %v1180 = vld [vmem:[%s1177 + $0x8] sm:$0xf]
    %v1181 = vld [vmem:[%s1177 + $0xc] sm:$0xf]
    %v1182 = vld [vmem:[%s1177 + $0x10] sm:$0xf]
    %v1183 = vld [vmem:[%s1177 + $0x14] sm:$0xf]
    %v1184 = vld [vmem:[%s1177 + $0x18] sm:$0xf]
    %v1185 = vld [vmem:[%s1177 + $0x1c] sm:$0xf]
    %v1186 = vld [vmem:[%s1177 + $0x20] sm:$0xf]
    %v1187 = vld [vmem:[%s1177 + $0x24] sm:$0xf]
    %v1188 = vld [vmem:[%s1177 + $0x28] sm:$0xf]
    %v1189 = vld [vmem:[%s1177 + $0x2c] sm:$0xf]
    %v1190 = vld [vmem:[%s1177 + $0x30] sm:$0xf]
    %v1191 = vld [vmem:[%s1177 + $0x34] sm:$0xf]
    %v1192 = vld [vmem:[%s1177 + $0x38] sm:$0xf]
    %v1193 = vld [vmem:[%s1177 + $0x3c] sm:$0xf]
    %s1194 = scalar_lea.vmem %s5, 1
    %v1195 = vld [vmem:[%s1194] sm:$0x1]
    %v1197 = vlaneseq
    %v1198 = vshrl.u32 %v1197, 7
    %v1199 = vsub.s32 0, %v1198
    %v1200 = vrot.slane %v1195, %v1199
    %v1218 = vunpack.c.l.b16 %v1178
    %v1219 = vunpack.c.l.b16 %v1179
    %v1220 = vunpack.c.l.b16 %v1180
    %v1221 = vunpack.c.l.b16 %v1181
    %v1222 = vunpack.c.l.b16 %v1182
    %v1223 = vunpack.c.l.b16 %v1183
    %v1224 = vunpack.c.l.b16 %v1184
    %v1225 = vunpack.c.l.b16 %v1185
    %v1226 = vunpack.c.l.b16 %v1186
    %v1227 = vunpack.c.l.b16 %v1187
    %v1228 = vunpack.c.l.b16 %v1188
    %v1229 = vunpack.c.l.b16 %v1189
    %v1230 = vunpack.c.l.b16 %v1190
    %v1231 = vunpack.c.l.b16 %v1191
    %v1232 = vunpack.c.l.b16 %v1192
    %v1233 = vunpack.c.l.b16 %v1193
    %v1234 = vpack.c.b16 %v1219, %v1218
    %v1235 = vpack.c.b16 %v1221, %v1220
    %v1236 = vpack.c.b16 %v1223, %v1222
    %v1237 = vpack.c.b16 %v1225, %v1224
    %v1238 = vpack.c.b16 %v1227, %v1226
    %v1239 = vpack.c.b16 %v1229, %v1228
    %v1240 = vpack.c.b16 %v1231, %v1230
    %v1241 = vpack.c.b16 %v1233, %v1232
    %1250 = vmatprep.subr.bf16.mxu0 0
    %1251 = vmatpush1.bf16.msra.mxu0 %v1241
    %1252 = vmatprep.subr.bf16.mxu0 0
    %1253 = vmatpush1.bf16.msra.mxu0 %v1240
    %1254 = vmatprep.subr.bf16.mxu0 0
    %1255 = vmatpush1.bf16.msra.mxu0 %v1239
    %1256 = vmatprep.subr.bf16.mxu0 0
    %1257 = vmatpush1.bf16.msra.mxu0 %v1238
    %1258 = vmatprep.subr.bf16.mxu0 0
    %1259 = vmatpush1.bf16.msra.mxu0 %v1237
    %1260 = vmatprep.subr.bf16.mxu0 0
    %1261 = vmatpush1.bf16.msra.mxu0 %v1236
    %1262 = vmatprep.subr.bf16.mxu0 0
    %1263 = vmatpush1.bf16.msra.mxu0 %v1235
    %1264 = vmatprep.subr.bf16.mxu0 0
    %1265 = vmatpush1.bf16.msra.mxu0 %v1234
    %1266 = vmatprep.subr.bf16.mxu0 0
    %1267 = vmatpush2.bf16.msra.mxu0 0
    %1268 = vmatprep.subr.bf16.mxu0 0
    %1269 = vmatpush2.bf16.msra.mxu0 0
    %1270 = vmatprep.subr.bf16.mxu0 0
    %1271 = vmatpush2.bf16.msra.mxu0 0
    %1272 = vmatprep.subr.bf16.mxu0 0
    %1273 = vmatpush2.bf16.msra.mxu0 0
    %1274 = vmatprep.subr.bf16.mxu0 0
    %1275 = vmatpush2.bf16.msra.mxu0 0
    %1276 = vmatprep.subr.bf16.mxu0 0
    %1277 = vmatpush2.bf16.msra.mxu0 0
    %1278 = vmatprep.subr.bf16.mxu0 0
    %1279 = vmatpush2.bf16.msra.mxu0 0
    %1280 = vmatprep.subr.bf16.mxu0 0
    %1281 = vmatpush2.bf16.msra.mxu0 0
    %1282 = vmatprep.mubr.bf16.mxu0 0
    %1283 = vmatmul.mubr.bf16.gmra.mxu0 %v436
    %v1284 = vpop.f32.mrf.mxu0
    %v1285 = vadd.f32 %v1200, %v1284
    %v1286 = vpop.f32.mrf.mxu0
    %v1287 = vpop.f32.mrf.mxu0
    %v1288 = vadd.f32 %v1200, %v1287
    %v1289 = vpop.f32.mrf.mxu0
    %1290 = vdwg.mxu0
    %v1291 = vmax.f32 %v1285, 0.0
    %v1292 = vmax.f32 %v1288, 0.0
    %v1293 = vpack.c.bf16 %v1292, %v1291
    %s1294 = scalar_lea.vmem [#allocation10], 64
    %v1295 = vld [vmem:[%s1294] sm:$0xf]
    %v1296 = vld [vmem:[%s1294 + $0x4] sm:$0xf]
    %v1297 = vld [vmem:[%s1294 + $0x8] sm:$0xf]
    %v1298 = vld [vmem:[%s1294 + $0xc] sm:$0xf]
    %v1299 = vld [vmem:[%s1294 + $0x10] sm:$0xf]
    %v1300 = vld [vmem:[%s1294 + $0x14] sm:$0xf]
    %v1301 = vld [vmem:[%s1294 + $0x18] sm:$0xf]
    %v1302 = vld [vmem:[%s1294 + $0x1c] sm:$0xf]
    %v1303 = vld [vmem:[%s1294 + $0x20] sm:$0xf]
    %v1304 = vld [vmem:[%s1294 + $0x24] sm:$0xf]
    %v1305 = vld [vmem:[%s1294 + $0x28] sm:$0xf]
    %v1306 = vld [vmem:[%s1294 + $0x2c] sm:$0xf]
    %v1307 = vld [vmem:[%s1294 + $0x30] sm:$0xf]
    %v1308 = vld [vmem:[%s1294 + $0x34] sm:$0xf]
    %v1309 = vld [vmem:[%s1294 + $0x38] sm:$0xf]
    %v1310 = vld [vmem:[%s1294 + $0x3c] sm:$0xf]
    %s1311 = scalar_lea.vmem %s7, 1
    %v1312 = vld [vmem:[%s1311] sm:$0x1]
    %v1314 = vlaneseq
    %v1315 = vshrl.u32 %v1314, 7
    %v1316 = vsub.s32 0, %v1315
    %v1317 = vrot.slane %v1312, %v1316
    %v1335 = vunpack.c.l.b16 %v1295
    %v1336 = vunpack.c.l.b16 %v1296
    %v1337 = vunpack.c.l.b16 %v1297
    %v1338 = vunpack.c.l.b16 %v1298
    %v1339 = vunpack.c.l.b16 %v1299
    %v1340 = vunpack.c.l.b16 %v1300
    %v1341 = vunpack.c.l.b16 %v1301
    %v1342 = vunpack.c.l.b16 %v1302
    %v1343 = vunpack.c.l.b16 %v1303
    %v1344 = vunpack.c.l.b16 %v1304
    %v1345 = vunpack.c.l.b16 %v1305
    %v1346 = vunpack.c.l.b16 %v1306
    %v1347 = vunpack.c.l.b16 %v1307
    %v1348 = vunpack.c.l.b16 %v1308
    %v1349 = vunpack.c.l.b16 %v1309
    %v1350 = vunpack.c.l.b16 %v1310
    %v1351 = vpack.c.b16 %v1336, %v1335
    %v1352 = vpack.c.b16 %v1338, %v1337
    %v1353 = vpack.c.b16 %v1340, %v1339
    %v1354 = vpack.c.b16 %v1342, %v1341
    %v1355 = vpack.c.b16 %v1344, %v1343
    %v1356 = vpack.c.b16 %v1346, %v1345
    %v1357 = vpack.c.b16 %v1348, %v1347
    %v1358 = vpack.c.b16 %v1350, %v1349
    %1367 = vmatprep.subr.bf16.mxu0 0
    %1368 = vmatpush1.bf16.msra.mxu0 %v1358
    %1369 = vmatprep.subr.bf16.mxu0 0
    %1370 = vmatpush1.bf16.msra.mxu0 %v1357
    %1371 = vmatprep.subr.bf16.mxu0 0
    %1372 = vmatpush1.bf16.msra.mxu0 %v1356
    %1373 = vmatprep.subr.bf16.mxu0 0
    %1374 = vmatpush1.bf16.msra.mxu0 %v1355
    %1375 = vmatprep.subr.bf16.mxu0 0
    %1376 = vmatpush1.bf16.msra.mxu0 %v1354
    %1377 = vmatprep.subr.bf16.mxu0 0
    %1378 = vmatpush1.bf16.msra.mxu0 %v1353
    %1379 = vmatprep.subr.bf16.mxu0 0
    %1380 = vmatpush1.bf16.msra.mxu0 %v1352
    %1381 = vmatprep.subr.bf16.mxu0 0
    %1382 = vmatpush1.bf16.msra.mxu0 %v1351
    %1383 = vmatprep.subr.bf16.mxu0 0
    %1384 = vmatpush2.bf16.msra.mxu0 0
    %1385 = vmatprep.subr.bf16.mxu0 0
    %1386 = vmatpush2.bf16.msra.mxu0 0
    %1387 = vmatprep.subr.bf16.mxu0 0
    %1388 = vmatpush2.bf16.msra.mxu0 0
    %1389 = vmatprep.subr.bf16.mxu0 0
    %1390 = vmatpush2.bf16.msra.mxu0 0
    %1391 = vmatprep.subr.bf16.mxu0 0
    %1392 = vmatpush2.bf16.msra.mxu0 0
    %1393 = vmatprep.subr.bf16.mxu0 0
    %1394 = vmatpush2.bf16.msra.mxu0 0
    %1395 = vmatprep.subr.bf16.mxu0 0
    %1396 = vmatpush2.bf16.msra.mxu0 0
    %1397 = vmatprep.subr.bf16.mxu0 0
    %1398 = vmatpush2.bf16.msra.mxu0 0
    %1399 = vmatprep.mubr.bf16.mxu0 0
    %1400 = vmatmul.mubr.bf16.gmra.mxu0 %v1293
    %v1401 = vpop.f32.mrf.mxu0
    %v1402 = vadd.f32 %v1317, %v1401
    %v1403 = vpop.f32.mrf.mxu0
    %v1404 = vpop.f32.mrf.mxu0
    %v1405 = vadd.f32 %v1317, %v1404
    %v1406 = vpop.f32.mrf.mxu0
    %1407 = vdwg.mxu0
    %s1408 = scalar_lea.vmem [#allocation13], 64
    %v1409 = vld [vmem:[%s1408] sm:$0xf]
    %v1410 = vld [vmem:[%s1408 + $0x4] sm:$0xf]
    %v1411 = vld [vmem:[%s1408 + $0x8] sm:$0xf]
    %v1412 = vld [vmem:[%s1408 + $0xc] sm:$0xf]
    %v1413 = vld [vmem:[%s1408 + $0x10] sm:$0xf]
    %v1414 = vld [vmem:[%s1408 + $0x14] sm:$0xf]
    %v1415 = vld [vmem:[%s1408 + $0x18] sm:$0xf]
    %v1416 = vld [vmem:[%s1408 + $0x1c] sm:$0xf]
    %v1417 = vld [vmem:[%s1408 + $0x20] sm:$0xf]
    %v1418 = vld [vmem:[%s1408 + $0x24] sm:$0xf]
    %v1419 = vld [vmem:[%s1408 + $0x28] sm:$0xf]
    %v1420 = vld [vmem:[%s1408 + $0x2c] sm:$0xf]
    %v1421 = vld [vmem:[%s1408 + $0x30] sm:$0xf]
    %v1422 = vld [vmem:[%s1408 + $0x34] sm:$0xf]
    %v1423 = vld [vmem:[%s1408 + $0x38] sm:$0xf]
    %v1424 = vld [vmem:[%s1408 + $0x3c] sm:$0xf]
    %s1425 = scalar_lea.vmem %s11, 1
    %v1426 = vld [vmem:[%s1425] sm:$0x1]
    %v1428 = vlaneseq
    %v1429 = vshrl.u32 %v1428, 7
    %v1430 = vsub.s32 0, %v1429
    %v1431 = vrot.slane %v1426, %v1430
    %v1449 = vunpack.c.l.b16 %v1409
    %v1450 = vunpack.c.l.b16 %v1410
    %v1451 = vunpack.c.l.b16 %v1411
    %v1452 = vunpack.c.l.b16 %v1412
    %v1453 = vunpack.c.l.b16 %v1413
    %v1454 = vunpack.c.l.b16 %v1414
    %v1455 = vunpack.c.l.b16 %v1415
    %v1456 = vunpack.c.l.b16 %v1416
    %v1457 = vunpack.c.l.b16 %v1417
    %v1458 = vunpack.c.l.b16 %v1418
    %v1459 = vunpack.c.l.b16 %v1419
    %v1460 = vunpack.c.l.b16 %v1420
    %v1461 = vunpack.c.l.b16 %v1421
    %v1462 = vunpack.c.l.b16 %v1422
    %v1463 = vunpack.c.l.b16 %v1423
    %v1464 = vunpack.c.l.b16 %v1424
    %v1465 = vpack.c.b16 %v1450, %v1449
    %v1466 = vpack.c.b16 %v1452, %v1451
    %v1467 = vpack.c.b16 %v1454, %v1453
    %v1468 = vpack.c.b16 %v1456, %v1455
    %v1469 = vpack.c.b16 %v1458, %v1457
    %v1470 = vpack.c.b16 %v1460, %v1459
    %v1471 = vpack.c.b16 %v1462, %v1461
    %v1472 = vpack.c.b16 %v1464, %v1463
    %1481 = vmatprep.subr.bf16.mxu0 0
    %1482 = vmatpush1.bf16.msra.mxu0 %v1472
    %1483 = vmatprep.subr.bf16.mxu0 0
    %1484 = vmatpush1.bf16.msra.mxu0 %v1471
    %1485 = vmatprep.subr.bf16.mxu0 0
    %1486 = vmatpush1.bf16.msra.mxu0 %v1470
    %1487 = vmatprep.subr.bf16.mxu0 0
    %1488 = vmatpush1.bf16.msra.mxu0 %v1469
    %1489 = vmatprep.subr.bf16.mxu0 0
    %1490 = vmatpush1.bf16.msra.mxu0 %v1468
    %1491 = vmatprep.subr.bf16.mxu0 0
    %1492 = vmatpush1.bf16.msra.mxu0 %v1467
    %1493 = vmatprep.subr.bf16.mxu0 0
    %1494 = vmatpush1.bf16.msra.mxu0 %v1466
    %1495 = vmatprep.subr.bf16.mxu0 0
    %1496 = vmatpush1.bf16.msra.mxu0 %v1465
    %1497 = vmatprep.subr.bf16.mxu0 0
    %1498 = vmatpush2.bf16.msra.mxu0 0
    %1499 = vmatprep.subr.bf16.mxu0 0
    %1500 = vmatpush2.bf16.msra.mxu0 0
    %1501 = vmatprep.subr.bf16.mxu0 0
    %1502 = vmatpush2.bf16.msra.mxu0 0
    %1503 = vmatprep.subr.bf16.mxu0 0
    %1504 = vmatpush2.bf16.msra.mxu0 0
    %1505 = vmatprep.subr.bf16.mxu0 0
    %1506 = vmatpush2.bf16.msra.mxu0 0
    %1507 = vmatprep.subr.bf16.mxu0 0
    %1508 = vmatpush2.bf16.msra.mxu0 0
    %1509 = vmatprep.subr.bf16.mxu0 0
    %1510 = vmatpush2.bf16.msra.mxu0 0
    %1511 = vmatprep.subr.bf16.mxu0 0
    %1512 = vmatpush2.bf16.msra.mxu0 0
    %1513 = vmatprep.mubr.bf16.mxu0 0
    %1514 = vmatmul.mubr.bf16.gmra.mxu0 %v707
    %v1515 = vpop.f32.mrf.mxu0
    %v1516 = vadd.f32 %v1431, %v1515
    %v1517 = vpop.f32.mrf.mxu0
    %v1518 = vpop.f32.mrf.mxu0
    %v1519 = vadd.f32 %v1431, %v1518
    %v1520 = vpop.f32.mrf.mxu0
    %1521 = vdwg.mxu0
    %v1522 = vmax.f32 %v1516, 0.0
    %v1523 = vmax.f32 %v1519, 0.0
    %v1524 = vpack.c.bf16 %v1523, %v1522
    %s1525 = scalar_lea.vmem [#allocation14], 64
    %v1526 = vld [vmem:[%s1525] sm:$0xf]
    %v1527 = vld [vmem:[%s1525 + $0x4] sm:$0xf]
    %v1528 = vld [vmem:[%s1525 + $0x8] sm:$0xf]
    %v1529 = vld [vmem:[%s1525 + $0xc] sm:$0xf]
    %v1530 = vld [vmem:[%s1525 + $0x10] sm:$0xf]
    %v1531 = vld [vmem:[%s1525 + $0x14] sm:$0xf]
    %v1532 = vld [vmem:[%s1525 + $0x18] sm:$0xf]
    %v1533 = vld [vmem:[%s1525 + $0x1c] sm:$0xf]
    %v1534 = vld [vmem:[%s1525 + $0x20] sm:$0xf]
    %v1535 = vld [vmem:[%s1525 + $0x24] sm:$0xf]
    %v1536 = vld [vmem:[%s1525 + $0x28] sm:$0xf]
    %v1537 = vld [vmem:[%s1525 + $0x2c] sm:$0xf]
    %v1538 = vld [vmem:[%s1525 + $0x30] sm:$0xf]
    %v1539 = vld [vmem:[%s1525 + $0x34] sm:$0xf]
    %v1540 = vld [vmem:[%s1525 + $0x38] sm:$0xf]
    %v1541 = vld [vmem:[%s1525 + $0x3c] sm:$0xf]
    %s1542 = scalar_lea.vmem %s13, 1
    %v1543 = vld [vmem:[%s1542] sm:$0x1]
    %v1545 = vlaneseq
    %v1546 = vshrl.u32 %v1545, 7
    %v1547 = vsub.s32 0, %v1546
    %v1548 = vrot.slane %v1543, %v1547
    %v1566 = vunpack.c.l.b16 %v1526
    %v1567 = vunpack.c.l.b16 %v1527
    %v1568 = vunpack.c.l.b16 %v1528
    %v1569 = vunpack.c.l.b16 %v1529
    %v1570 = vunpack.c.l.b16 %v1530
    %v1571 = vunpack.c.l.b16 %v1531
    %v1572 = vunpack.c.l.b16 %v1532
    %v1573 = vunpack.c.l.b16 %v1533
    %v1574 = vunpack.c.l.b16 %v1534
    %v1575 = vunpack.c.l.b16 %v1535
    %v1576 = vunpack.c.l.b16 %v1536
    %v1577 = vunpack.c.l.b16 %v1537
    %v1578 = vunpack.c.l.b16 %v1538
    %v1579 = vunpack.c.l.b16 %v1539
    %v1580 = vunpack.c.l.b16 %v1540
    %v1581 = vunpack.c.l.b16 %v1541
    %v1582 = vpack.c.b16 %v1567, %v1566
    %v1583 = vpack.c.b16 %v1569, %v1568
    %v1584 = vpack.c.b16 %v1571, %v1570
    %v1585 = vpack.c.b16 %v1573, %v1572
    %v1586 = vpack.c.b16 %v1575, %v1574
    %v1587 = vpack.c.b16 %v1577, %v1576
    %v1588 = vpack.c.b16 %v1579, %v1578
    %v1589 = vpack.c.b16 %v1581, %v1580
    %1598 = vmatprep.subr.bf16.mxu0 0
    %1599 = vmatpush1.bf16.msra.mxu0 %v1589
    %1600 = vmatprep.subr.bf16.mxu0 0
    %1601 = vmatpush1.bf16.msra.mxu0 %v1588
    %1602 = vmatprep.subr.bf16.mxu0 0
    %1603 = vmatpush1.bf16.msra.mxu0 %v1587
    %1604 = vmatprep.subr.bf16.mxu0 0
    %1605 = vmatpush1.bf16.msra.mxu0 %v1586
    %1606 = vmatprep.subr.bf16.mxu0 0
    %1607 = vmatpush1.bf16.msra.mxu0 %v1585
    %1608 = vmatprep.subr.bf16.mxu0 0
    %1609 = vmatpush1.bf16.msra.mxu0 %v1584
    %1610 = vmatprep.subr.bf16.mxu0 0
    %1611 = vmatpush1.bf16.msra.mxu0 %v1583
    %1612 = vmatprep.subr.bf16.mxu0 0
    %1613 = vmatpush1.bf16.msra.mxu0 %v1582
    %1614 = vmatprep.subr.bf16.mxu0 0
    %1615 = vmatpush2.bf16.msra.mxu0 0
    %1616 = vmatprep.subr.bf16.mxu0 0
    %1617 = vmatpush2.bf16.msra.mxu0 0
    %1618 = vmatprep.subr.bf16.mxu0 0
    %1619 = vmatpush2.bf16.msra.mxu0 0
    %1620 = vmatprep.subr.bf16.mxu0 0
    %1621 = vmatpush2.bf16.msra.mxu0 0
    %1622 = vmatprep.subr.bf16.mxu0 0
    %1623 = vmatpush2.bf16.msra.mxu0 0
    %1624 = vmatprep.subr.bf16.mxu0 0
    %1625 = vmatpush2.bf16.msra.mxu0 0
    %1626 = vmatprep.subr.bf16.mxu0 0
    %1627 = vmatpush2.bf16.msra.mxu0 0
    %1628 = vmatprep.subr.bf16.mxu0 0
    %1629 = vmatpush2.bf16.msra.mxu0 0
    %1630 = vmatprep.mubr.bf16.mxu0 0
    %1631 = vmatmul.mubr.bf16.gmra.mxu0 %v1524
    %v1632 = vpop.f32.mrf.mxu0
    %v1633 = vadd.f32 %v1548, %v1632
    %v1634 = vpop.f32.mrf.mxu0
    %v1635 = vpop.f32.mrf.mxu0
    %v1636 = vadd.f32 %v1548, %v1635
    %v1637 = vpop.f32.mrf.mxu0
    %1638 = vdwg.mxu0
    %v1639 = vadd.f32 %v1402, %v1633
    %v1640 = vadd.f32 %v1405, %v1636
    %v1641 = vxor.u32 %v1639, 2147483648
    %v1642 = vxor.u32 %v1640, 2147483648
    %v1643 = vmul.f32 %v1641, 1.442695
    %v1644 = vpow.pop %v1643
    %v1645 = vmul.f32 %v1642, 1.442695
    %v1646 = vpow.pop %v1645
    %v1647 = vadd.f32 %v1644, 1.0
    %v1648 = vadd.f32 %v1646, 1.0
    %v1649 = vrcp.pop %v1647
    %v1650 = vmul.f32 1.0, %v1649
    %v1651 = vrcp.pop %v1648
    %v1652 = vmul.f32 1.0, %v1651
    %s1653 = scalar_lea.vmem [#allocation8], 128
    %v1654 = vld [vmem:[%s1653] sm:$0xf]
    %v1655 = vld [vmem:[%s1653 + $0x4] sm:$0xf]
    %v1656 = vld [vmem:[%s1653 + $0x8] sm:$0xf]
    %v1657 = vld [vmem:[%s1653 + $0xc] sm:$0xf]
    %v1658 = vld [vmem:[%s1653 + $0x10] sm:$0xf]
    %v1659 = vld [vmem:[%s1653 + $0x14] sm:$0xf]
    %v1660 = vld [vmem:[%s1653 + $0x18] sm:$0xf]
    %v1661 = vld [vmem:[%s1653 + $0x1c] sm:$0xf]
    %v1662 = vld [vmem:[%s1653 + $0x20] sm:$0xf]
    %v1663 = vld [vmem:[%s1653 + $0x24] sm:$0xf]
    %v1664 = vld [vmem:[%s1653 + $0x28] sm:$0xf]
    %v1665 = vld [vmem:[%s1653 + $0x2c] sm:$0xf]
    %v1666 = vld [vmem:[%s1653 + $0x30] sm:$0xf]
    %v1667 = vld [vmem:[%s1653 + $0x34] sm:$0xf]
    %v1668 = vld [vmem:[%s1653 + $0x38] sm:$0xf]
    %v1669 = vld [vmem:[%s1653 + $0x3c] sm:$0xf]
    %s1670 = scalar_lea.vmem %s5, 2
    %v1671 = vld [vmem:[%s1670] sm:$0x1]
    %v1673 = vlaneseq
    %v1674 = vshrl.u32 %v1673, 7
    %v1675 = vsub.s32 0, %v1674
    %v1676 = vrot.slane %v1671, %v1675
    %v1694 = vunpack.c.l.b16 %v1654
    %v1695 = vunpack.c.l.b16 %v1655
    %v1696 = vunpack.c.l.b16 %v1656
    %v1697 = vunpack.c.l.b16 %v1657
    %v1698 = vunpack.c.l.b16 %v1658
    %v1699 = vunpack.c.l.b16 %v1659
    %v1700 = vunpack.c.l.b16 %v1660
    %v1701 = vunpack.c.l.b16 %v1661
    %v1702 = vunpack.c.l.b16 %v1662
    %v1703 = vunpack.c.l.b16 %v1663
    %v1704 = vunpack.c.l.b16 %v1664
    %v1705 = vunpack.c.l.b16 %v1665
    %v1706 = vunpack.c.l.b16 %v1666
    %v1707 = vunpack.c.l.b16 %v1667
    %v1708 = vunpack.c.l.b16 %v1668
    %v1709 = vunpack.c.l.b16 %v1669
    %v1710 = vpack.c.b16 %v1695, %v1694
    %v1711 = vpack.c.b16 %v1697, %v1696
    %v1712 = vpack.c.b16 %v1699, %v1698
    %v1713 = vpack.c.b16 %v1701, %v1700
    %v1714 = vpack.c.b16 %v1703, %v1702
    %v1715 = vpack.c.b16 %v1705, %v1704
    %v1716 = vpack.c.b16 %v1707, %v1706
    %v1717 = vpack.c.b16 %v1709, %v1708
    %1726 = vmatprep.subr.bf16.mxu0 0
    %1727 = vmatpush1.bf16.msra.mxu0 %v1717
    %1728 = vmatprep.subr.bf16.mxu0 0
    %1729 = vmatpush1.bf16.msra.mxu0 %v1716
    %1730 = vmatprep.subr.bf16.mxu0 0
    %1731 = vmatpush1.bf16.msra.mxu0 %v1715
    %1732 = vmatprep.subr.bf16.mxu0 0
    %1733 = vmatpush1.bf16.msra.mxu0 %v1714
    %1734 = vmatprep.subr.bf16.mxu0 0
    %1735 = vmatpush1.bf16.msra.mxu0 %v1713
    %1736 = vmatprep.subr.bf16.mxu0 0
    %1737 = vmatpush1.bf16.msra.mxu0 %v1712
    %1738 = vmatprep.subr.bf16.mxu0 0
    %1739 = vmatpush1.bf16.msra.mxu0 %v1711
    %1740 = vmatprep.subr.bf16.mxu0 0
    %1741 = vmatpush1.bf16.msra.mxu0 %v1710
    %1742 = vmatprep.subr.bf16.mxu0 0
    %1743 = vmatpush2.bf16.msra.mxu0 0
    %1744 = vmatprep.subr.bf16.mxu0 0
    %1745 = vmatpush2.bf16.msra.mxu0 0
    %1746 = vmatprep.subr.bf16.mxu0 0
    %1747 = vmatpush2.bf16.msra.mxu0 0
    %1748 = vmatprep.subr.bf16.mxu0 0
    %1749 = vmatpush2.bf16.msra.mxu0 0
    %1750 = vmatprep.subr.bf16.mxu0 0
    %1751 = vmatpush2.bf16.msra.mxu0 0
    %1752 = vmatprep.subr.bf16.mxu0 0
    %1753 = vmatpush2.bf16.msra.mxu0 0
    %1754 = vmatprep.subr.bf16.mxu0 0
    %1755 = vmatpush2.bf16.msra.mxu0 0
    %1756 = vmatprep.subr.bf16.mxu0 0
    %1757 = vmatpush2.bf16.msra.mxu0 0
    %1758 = vmatprep.mubr.bf16.mxu0 0
    %1759 = vmatmul.mubr.bf16.gmra.mxu0 %v437
    %v1760 = vpop.f32.mrf.mxu0
    %v1761 = vadd.f32 %v1676, %v1760
    %v1762 = vpop.f32.mrf.mxu0
    %v1763 = vpop.f32.mrf.mxu0
    %v1764 = vadd.f32 %v1676, %v1763
    %v1765 = vpop.f32.mrf.mxu0
    %1766 = vdwg.mxu0
    %v1767 = vmax.f32 %v1761, 0.0
    %v1768 = vmax.f32 %v1764, 0.0
    %v1769 = vpack.c.bf16 %v1768, %v1767
    %s1770 = scalar_lea.vmem [#allocation10], 128
    %v1771 = vld [vmem:[%s1770] sm:$0xf]
    %v1772 = vld [vmem:[%s1770 + $0x4] sm:$0xf]
    %v1773 = vld [vmem:[%s1770 + $0x8] sm:$0xf]
    %v1774 = vld [vmem:[%s1770 + $0xc] sm:$0xf]
    %v1775 = vld [vmem:[%s1770 + $0x10] sm:$0xf]
    %v1776 = vld [vmem:[%s1770 + $0x14] sm:$0xf]
    %v1777 = vld [vmem:[%s1770 + $0x18] sm:$0xf]
    %v1778 = vld [vmem:[%s1770 + $0x1c] sm:$0xf]
    %v1779 = vld [vmem:[%s1770 + $0x20] sm:$0xf]
    %v1780 = vld [vmem:[%s1770 + $0x24] sm:$0xf]
    %v1781 = vld [vmem:[%s1770 + $0x28] sm:$0xf]
    %v1782 = vld [vmem:[%s1770 + $0x2c] sm:$0xf]
    %v1783 = vld [vmem:[%s1770 + $0x30] sm:$0xf]
    %v1784 = vld [vmem:[%s1770 + $0x34] sm:$0xf]
    %v1785 = vld [vmem:[%s1770 + $0x38] sm:$0xf]
    %v1786 = vld [vmem:[%s1770 + $0x3c] sm:$0xf]
    %s1787 = scalar_lea.vmem %s7, 2
    %v1788 = vld [vmem:[%s1787] sm:$0x1]
    %v1790 = vlaneseq
    %v1791 = vshrl.u32 %v1790, 7
    %v1792 = vsub.s32 0, %v1791
    %v1793 = vrot.slane %v1788, %v1792
    %v1811 = vunpack.c.l.b16 %v1771
    %v1812 = vunpack.c.l.b16 %v1772
    %v1813 = vunpack.c.l.b16 %v1773
    %v1814 = vunpack.c.l.b16 %v1774
    %v1815 = vunpack.c.l.b16 %v1775
    %v1816 = vunpack.c.l.b16 %v1776
    %v1817 = vunpack.c.l.b16 %v1777
    %v1818 = vunpack.c.l.b16 %v1778
    %v1819 = vunpack.c.l.b16 %v1779
    %v1820 = vunpack.c.l.b16 %v1780
    %v1821 = vunpack.c.l.b16 %v1781
    %v1822 = vunpack.c.l.b16 %v1782
    %v1823 = vunpack.c.l.b16 %v1783
    %v1824 = vunpack.c.l.b16 %v1784
    %v1825 = vunpack.c.l.b16 %v1785
    %v1826 = vunpack.c.l.b16 %v1786
    %v1827 = vpack.c.b16 %v1812, %v1811
    %v1828 = vpack.c.b16 %v1814, %v1813
    %v1829 = vpack.c.b16 %v1816, %v1815
    %v1830 = vpack.c.b16 %v1818, %v1817
    %v1831 = vpack.c.b16 %v1820, %v1819
    %v1832 = vpack.c.b16 %v1822, %v1821
    %v1833 = vpack.c.b16 %v1824, %v1823
    %v1834 = vpack.c.b16 %v1826, %v1825
    %1843 = vmatprep.subr.bf16.mxu0 0
    %1844 = vmatpush1.bf16.msra.mxu0 %v1834
    %1845 = vmatprep.subr.bf16.mxu0 0
    %1846 = vmatpush1.bf16.msra.mxu0 %v1833
    %1847 = vmatprep.subr.bf16.mxu0 0
    %1848 = vmatpush1.bf16.msra.mxu0 %v1832
    %1849 = vmatprep.subr.bf16.mxu0 0
    %1850 = vmatpush1.bf16.msra.mxu0 %v1831
    %1851 = vmatprep.subr.bf16.mxu0 0
    %1852 = vmatpush1.bf16.msra.mxu0 %v1830
    %1853 = vmatprep.subr.bf16.mxu0 0
    %1854 = vmatpush1.bf16.msra.mxu0 %v1829
    %1855 = vmatprep.subr.bf16.mxu0 0
    %1856 = vmatpush1.bf16.msra.mxu0 %v1828
    %1857 = vmatprep.subr.bf16.mxu0 0
    %1858 = vmatpush1.bf16.msra.mxu0 %v1827
    %1859 = vmatprep.subr.bf16.mxu0 0
    %1860 = vmatpush2.bf16.msra.mxu0 0
    %1861 = vmatprep.subr.bf16.mxu0 0
    %1862 = vmatpush2.bf16.msra.mxu0 0
    %1863 = vmatprep.subr.bf16.mxu0 0
    %1864 = vmatpush2.bf16.msra.mxu0 0
    %1865 = vmatprep.subr.bf16.mxu0 0
    %1866 = vmatpush2.bf16.msra.mxu0 0
    %1867 = vmatprep.subr.bf16.mxu0 0
    %1868 = vmatpush2.bf16.msra.mxu0 0
    %1869 = vmatprep.subr.bf16.mxu0 0
    %1870 = vmatpush2.bf16.msra.mxu0 0
    %1871 = vmatprep.subr.bf16.mxu0 0
    %1872 = vmatpush2.bf16.msra.mxu0 0
    %1873 = vmatprep.subr.bf16.mxu0 0
    %1874 = vmatpush2.bf16.msra.mxu0 0
    %1875 = vmatprep.mubr.bf16.mxu0 0
    %1876 = vmatmul.mubr.bf16.gmra.mxu0 %v1769
    %v1877 = vpop.f32.mrf.mxu0
    %v1878 = vadd.f32 %v1793, %v1877
    %v1879 = vpop.f32.mrf.mxu0
    %v1880 = vpop.f32.mrf.mxu0
    %v1881 = vadd.f32 %v1793, %v1880
    %v1882 = vpop.f32.mrf.mxu0
    %1883 = vdwg.mxu0
    %s1884 = scalar_lea.vmem [#allocation13], 128
    %v1885 = vld [vmem:[%s1884] sm:$0xf]
    %v1886 = vld [vmem:[%s1884 + $0x4] sm:$0xf]
    %v1887 = vld [vmem:[%s1884 + $0x8] sm:$0xf]
    %v1888 = vld [vmem:[%s1884 + $0xc] sm:$0xf]
    %v1889 = vld [vmem:[%s1884 + $0x10] sm:$0xf]
    %v1890 = vld [vmem:[%s1884 + $0x14] sm:$0xf]
    %v1891 = vld [vmem:[%s1884 + $0x18] sm:$0xf]
    %v1892 = vld [vmem:[%s1884 + $0x1c] sm:$0xf]
    %v1893 = vld [vmem:[%s1884 + $0x20] sm:$0xf]
    %v1894 = vld [vmem:[%s1884 + $0x24] sm:$0xf]
    %v1895 = vld [vmem:[%s1884 + $0x28] sm:$0xf]
    %v1896 = vld [vmem:[%s1884 + $0x2c] sm:$0xf]
    %v1897 = vld [vmem:[%s1884 + $0x30] sm:$0xf]
    %v1898 = vld [vmem:[%s1884 + $0x34] sm:$0xf]
    %v1899 = vld [vmem:[%s1884 + $0x38] sm:$0xf]
    %v1900 = vld [vmem:[%s1884 + $0x3c] sm:$0xf]
    %s1901 = scalar_lea.vmem %s11, 2
    %v1902 = vld [vmem:[%s1901] sm:$0x1]
    %v1904 = vlaneseq
    %v1905 = vshrl.u32 %v1904, 7
    %v1906 = vsub.s32 0, %v1905
    %v1907 = vrot.slane %v1902, %v1906
    %v1925 = vunpack.c.l.b16 %v1885
    %v1926 = vunpack.c.l.b16 %v1886
    %v1927 = vunpack.c.l.b16 %v1887
    %v1928 = vunpack.c.l.b16 %v1888
    %v1929 = vunpack.c.l.b16 %v1889
    %v1930 = vunpack.c.l.b16 %v1890
    %v1931 = vunpack.c.l.b16 %v1891
    %v1932 = vunpack.c.l.b16 %v1892
    %v1933 = vunpack.c.l.b16 %v1893
    %v1934 = vunpack.c.l.b16 %v1894
    %v1935 = vunpack.c.l.b16 %v1895
    %v1936 = vunpack.c.l.b16 %v1896
    %v1937 = vunpack.c.l.b16 %v1897
    %v1938 = vunpack.c.l.b16 %v1898
    %v1939 = vunpack.c.l.b16 %v1899
    %v1940 = vunpack.c.l.b16 %v1900
    %v1941 = vpack.c.b16 %v1926, %v1925
    %v1942 = vpack.c.b16 %v1928, %v1927
    %v1943 = vpack.c.b16 %v1930, %v1929
    %v1944 = vpack.c.b16 %v1932, %v1931
    %v1945 = vpack.c.b16 %v1934, %v1933
    %v1946 = vpack.c.b16 %v1936, %v1935
    %v1947 = vpack.c.b16 %v1938, %v1937
    %v1948 = vpack.c.b16 %v1940, %v1939
    %1957 = vmatprep.subr.bf16.mxu0 0
    %1958 = vmatpush1.bf16.msra.mxu0 %v1948
    %1959 = vmatprep.subr.bf16.mxu0 0
    %1960 = vmatpush1.bf16.msra.mxu0 %v1947
    %1961 = vmatprep.subr.bf16.mxu0 0
    %1962 = vmatpush1.bf16.msra.mxu0 %v1946
    %1963 = vmatprep.subr.bf16.mxu0 0
    %1964 = vmatpush1.bf16.msra.mxu0 %v1945
    %1965 = vmatprep.subr.bf16.mxu0 0
    %1966 = vmatpush1.bf16.msra.mxu0 %v1944
    %1967 = vmatprep.subr.bf16.mxu0 0
    %1968 = vmatpush1.bf16.msra.mxu0 %v1943
    %1969 = vmatprep.subr.bf16.mxu0 0
    %1970 = vmatpush1.bf16.msra.mxu0 %v1942
    %1971 = vmatprep.subr.bf16.mxu0 0
    %1972 = vmatpush1.bf16.msra.mxu0 %v1941
    %1973 = vmatprep.subr.bf16.mxu0 0
    %1974 = vmatpush2.bf16.msra.mxu0 0
    %1975 = vmatprep.subr.bf16.mxu0 0
    %1976 = vmatpush2.bf16.msra.mxu0 0
    %1977 = vmatprep.subr.bf16.mxu0 0
    %1978 = vmatpush2.bf16.msra.mxu0 0
    %1979 = vmatprep.subr.bf16.mxu0 0
    %1980 = vmatpush2.bf16.msra.mxu0 0
    %1981 = vmatprep.subr.bf16.mxu0 0
    %1982 = vmatpush2.bf16.msra.mxu0 0
    %1983 = vmatprep.subr.bf16.mxu0 0
    %1984 = vmatpush2.bf16.msra.mxu0 0
    %1985 = vmatprep.subr.bf16.mxu0 0
    %1986 = vmatpush2.bf16.msra.mxu0 0
    %1987 = vmatprep.subr.bf16.mxu0 0
    %1988 = vmatpush2.bf16.msra.mxu0 0
    %1989 = vmatprep.mubr.bf16.mxu0 0
    %1990 = vmatmul.mubr.bf16.gmra.mxu0 %v708
    %v1991 = vpop.f32.mrf.mxu0
    %v1992 = vadd.f32 %v1907, %v1991
    %v1993 = vpop.f32.mrf.mxu0
    %v1994 = vpop.f32.mrf.mxu0
    %v1995 = vadd.f32 %v1907, %v1994
    %v1996 = vpop.f32.mrf.mxu0
    %1997 = vdwg.mxu0
    %v1998 = vmax.f32 %v1992, 0.0
    %v1999 = vmax.f32 %v1995, 0.0
    %v2000 = vpack.c.bf16 %v1999, %v1998
    %s2001 = scalar_lea.vmem [#allocation14], 128
    %v2002 = vld [vmem:[%s2001] sm:$0xf]
    %v2003 = vld [vmem:[%s2001 + $0x4] sm:$0xf]
    %v2004 = vld [vmem:[%s2001 + $0x8] sm:$0xf]
    %v2005 = vld [vmem:[%s2001 + $0xc] sm:$0xf]
    %v2006 = vld [vmem:[%s2001 + $0x10] sm:$0xf]
    %v2007 = vld [vmem:[%s2001 + $0x14] sm:$0xf]
    %v2008 = vld [vmem:[%s2001 + $0x18] sm:$0xf]
    %v2009 = vld [vmem:[%s2001 + $0x1c] sm:$0xf]
    %v2010 = vld [vmem:[%s2001 + $0x20] sm:$0xf]
    %v2011 = vld [vmem:[%s2001 + $0x24] sm:$0xf]
    %v2012 = vld [vmem:[%s2001 + $0x28] sm:$0xf]
    %v2013 = vld [vmem:[%s2001 + $0x2c] sm:$0xf]
    %v2014 = vld [vmem:[%s2001 + $0x30] sm:$0xf]
    %v2015 = vld [vmem:[%s2001 + $0x34] sm:$0xf]
    %v2016 = vld [vmem:[%s2001 + $0x38] sm:$0xf]
    %v2017 = vld [vmem:[%s2001 + $0x3c] sm:$0xf]
    %s2018 = scalar_lea.vmem %s13, 2
    %v2019 = vld [vmem:[%s2018] sm:$0x1]
    %v2021 = vlaneseq
    %v2022 = vshrl.u32 %v2021, 7
    %v2023 = vsub.s32 0, %v2022
    %v2024 = vrot.slane %v2019, %v2023
    %v2042 = vunpack.c.l.b16 %v2002
    %v2043 = vunpack.c.l.b16 %v2003
    %v2044 = vunpack.c.l.b16 %v2004
    %v2045 = vunpack.c.l.b16 %v2005
    %v2046 = vunpack.c.l.b16 %v2006
    %v2047 = vunpack.c.l.b16 %v2007
    %v2048 = vunpack.c.l.b16 %v2008
    %v2049 = vunpack.c.l.b16 %v2009
    %v2050 = vunpack.c.l.b16 %v2010
    %v2051 = vunpack.c.l.b16 %v2011
    %v2052 = vunpack.c.l.b16 %v2012
    %v2053 = vunpack.c.l.b16 %v2013
    %v2054 = vunpack.c.l.b16 %v2014
    %v2055 = vunpack.c.l.b16 %v2015
    %v2056 = vunpack.c.l.b16 %v2016
    %v2057 = vunpack.c.l.b16 %v2017
    %v2058 = vpack.c.b16 %v2043, %v2042
    %v2059 = vpack.c.b16 %v2045, %v2044
    %v2060 = vpack.c.b16 %v2047, %v2046
    %v2061 = vpack.c.b16 %v2049, %v2048
    %v2062 = vpack.c.b16 %v2051, %v2050
    %v2063 = vpack.c.b16 %v2053, %v2052
    %v2064 = vpack.c.b16 %v2055, %v2054
    %v2065 = vpack.c.b16 %v2057, %v2056
    %2074 = vmatprep.subr.bf16.mxu0 0
    %2075 = vmatpush1.bf16.msra.mxu0 %v2065
    %2076 = vmatprep.subr.bf16.mxu0 0
    %2077 = vmatpush1.bf16.msra.mxu0 %v2064
    %2078 = vmatprep.subr.bf16.mxu0 0
    %2079 = vmatpush1.bf16.msra.mxu0 %v2063
    %2080 = vmatprep.subr.bf16.mxu0 0
    %2081 = vmatpush1.bf16.msra.mxu0 %v2062
    %2082 = vmatprep.subr.bf16.mxu0 0
    %2083 = vmatpush1.bf16.msra.mxu0 %v2061
    %2084 = vmatprep.subr.bf16.mxu0 0
    %2085 = vmatpush1.bf16.msra.mxu0 %v2060
    %2086 = vmatprep.subr.bf16.mxu0 0
    %2087 = vmatpush1.bf16.msra.mxu0 %v2059
    %2088 = vmatprep.subr.bf16.mxu0 0
    %2089 = vmatpush1.bf16.msra.mxu0 %v2058
    %2090 = vmatprep.subr.bf16.mxu0 0
    %2091 = vmatpush2.bf16.msra.mxu0 0
    %2092 = vmatprep.subr.bf16.mxu0 0
    %2093 = vmatpush2.bf16.msra.mxu0 0
    %2094 = vmatprep.subr.bf16.mxu0 0
    %2095 = vmatpush2.bf16.msra.mxu0 0
    %2096 = vmatprep.subr.bf16.mxu0 0
    %2097 = vmatpush2.bf16.msra.mxu0 0
    %2098 = vmatprep.subr.bf16.mxu0 0
    %2099 = vmatpush2.bf16.msra.mxu0 0
    %2100 = vmatprep.subr.bf16.mxu0 0
    %2101 = vmatpush2.bf16.msra.mxu0 0
    %2102 = vmatprep.subr.bf16.mxu0 0
    %2103 = vmatpush2.bf16.msra.mxu0 0
    %2104 = vmatprep.subr.bf16.mxu0 0
    %2105 = vmatpush2.bf16.msra.mxu0 0
    %2106 = vmatprep.mubr.bf16.mxu0 0
    %2107 = vmatmul.mubr.bf16.gmra.mxu0 %v2000
    %v2108 = vpop.f32.mrf.mxu0
    %v2109 = vadd.f32 %v2024, %v2108
    %v2110 = vpop.f32.mrf.mxu0
    %v2111 = vpop.f32.mrf.mxu0
    %v2112 = vadd.f32 %v2024, %v2111
    %v2113 = vpop.f32.mrf.mxu0
    %2114 = vdwg.mxu0
    %v2115 = vmul.f32 %v2109, %v1174
    %v2116 = vmul.f32 %v2112, %v1176
    %v2117 = vadd.f32 %v1878, %v2115
    %v2118 = vadd.f32 %v1881, %v2116
    %v2119 = vtanh.pop %v2117
    %v2120 = vtanh.pop %v2118
    %v2121 = vsub.f32 1.0, %v1650
    %v2122 = vsub.f32 1.0, %v1652
    %v2123 = vmul.f32 %v2121, %v2119
    %v2124 = vmul.f32 %v2122, %v2120
    %v2125 = vmul.f32 %v1650, %v158
    %v2126 = vmul.f32 %v1652, %v159
    %v2127 = vadd.f32 %v2123, %v2125
    %v2128 = vadd.f32 %v2124, %v2126
    %2129 = vst [vmem:[#allocation16] sm:$0xff] %v2127
    %2130 = vst [vmem:[#allocation16 + $0x8] sm:$0xff] %v2128
    // Predicated region
    $region90: #{tpu_custom_call.1} parent=1 // pred_check
      _
    $region91: #{tpu_custom_call.1} parent=1 // pred_check_branch
      %2132 = sbr.rel (0) target = $region93
    $region92: #{tpu_custom_call.1} parent=1 // pred_region
      %s2134 = ssub.s32 256, 256
      %2135 = vsyncadd [#allocation4], %s2134
      %s2136 = sshll.u32 [#allocation16], 4
      %s2137 = int_to_ptr.vmem [resolvable:$true] %s2136
      %2142 = dma.vmem_to_hbm [thread:$0]  %s2137, 256, %s14, [#allocation4], 128, 128, 8
    $region93: #{tpu_custom_call.1} parent=1 // pred_fallthru
      _
    // Predicated region
    $region94: #{tpu_custom_call.1} parent=1 // pred_check
      _
    $region95: #{tpu_custom_call.1} parent=1 // pred_check_branch
      %2144 = sbr.rel (0) target = $region97
    $region96: #{tpu_custom_call.1} parent=1 // pred_region
      %2145 = dma.done [#allocation4], 256
    $region97: #{tpu_custom_call.1} parent=1 // pred_fallthru
      _
    %2146 = vsyncpa [#allocation3], 1
    %2147 = vsyncpa [#allocation6], 1
    %2148 = vsyncpa [#allocation9], 1
    %2149 = vsyncpa [#allocation12], 1
    %2150 = vsyncpa [#allocation15], 1
    %2151 = vsyncpa [#allocation4], 1

</llo_original>
